<compile_context>
chip_gen: v6e
topology: v6e:2x2x1
jax: 0.10.0
libtpu: 0.0.40
codegen_flags: <defaults>
</compile_context>

<pallas_src>
import functools
import math

import jax
import jax.numpy as jnp
import numpy as np
from jax import lax
from jax.experimental import pallas as pl
from jax.experimental.pallas import tpu as pltpu


# ----------------------------------------------------------------------------- helpers
def _round_up(x, m):
    return ((x + m - 1) // m) * m


def _lse_keep(x):
    """logsumexp over the last axis, keepdims=True."""
    m = jnp.max(x, axis=-1, keepdims=True)
    return m + jnp.log(jnp.sum(jnp.exp(x - m), axis=-1, keepdims=True))


def _shift_lanes(x, s):
    """result[..., j] = x[..., (j + s) mod W] for a static shift s (lane rotate)."""
    w = x.shape[-1]
    s = s % w
    if s == 0:
        return x
    return jnp.concatenate([x[..., s:], x[..., :s]], axis=-1)


def _vmem_capacity_bytes():
    try:
        info = pltpu.get_tpu_info()
        for attr in ("vmem_capacity_bytes", "vmem_size_bytes", "vmem_bytes"):
            v = getattr(info, attr, None)
            if v:
                return int(v)
    except Exception:
        pass
    return 64 * 1024 * 1024        # conservative default (v7x per-TensorCore)


def _pick_tile_n(N, E, S, H, O, budget):
    """Largest K1 row tile whose estimated VMEM footprint fits the budget."""
    HH, SHO = H * H, S * H * O
    Wt = HH + SHO
    SO, SH = S * O, S * H
    fixed = 2 * (E * Wt * 2 + Wt * Wt * 4 + SO * SHO * 4 + SHO * SH * 4
                 + SH * H * 4 + 16 * Wt * 4)
    per_row = 2 * (E * 2 + SO * 4) + 2 * (HH + SHO + H) * 4 + 8 * Wt * 4 + 2 * SHO * 4
    cap = max(8, _round_up(N, 8))
    for tn in (1024, 512, 256, 128, 64, 32, 16, 8):
        if tn > cap:
            continue
        if fixed + tn * per_row <= budget:
            return tn
    return 8


def _pick_tb(B, L, H, TC, budget):
    """Largest sequence-batch per K2 grid step (must divide B) fitting the VMEM budget."""
    sub_h = _round_up(max(H, 1), 8)
    lane_h = _round_up(max(H, 1), 128)
    slab = sub_h * lane_h * 4                  # one padded (H, H) tile
    row = lane_h * 4                           # one padded (1, H) row
    for tb in (8, 4, 2, 1):
        if B % tb:
            continue
        fp = 2 * tb * L * slab                 # trans block (double buffered)
        fp += 2 * tb * _round_up(L, 8) * row   # ev block
        fp += tb * (_round_up(L + 1, 8) + _round_up(L, 8)) * row   # alpha/beta scratch
        fp += 4 * tb * min(TC, L) * slab       # xi time-chunk temporaries
        if fp <= budget:
            return tb
    return 1


# ============================================================================ kernel 1
# Neural module (fused Linear), vectorized grouped softmax, mixture with static
# matrices, log(), and the emission-evidence reduction.  One row tile per grid step.
def _nn_mix_kernel(x_ref, obs_ref, w_ref, b_ref, statmix_ref, wmix_ref,
                   masks_ref, gsum_ref, robs_ref, gev_ref, msh_ref,
                   lt_ref, le_ref, lev_ref, *, HH, shifts):
    # single fused wide matmul: bf16 x @ bf16 [w_trans | w_emiss], f32 accumulation.
    z = jnp.dot(x_ref[...], w_ref[...], preferred_element_type=jnp.float32) + b_ref[...]

    # exact per-group max (segmented max) via masked lane-shift doubling — full width,
    # safe for arbitrary cross-group logit spread (no per-row-max underflow hazard).
    m = z
    k = len(shifts)
    for i, s in enumerate(shifts):                 # suffix pass: pull from higher lanes
        ok = masks_ref[i:i + 1, :] > 0.5
        m = jnp.where(ok, jnp.maximum(m, _shift_lanes(m, s)), m)
    for i, s in enumerate(shifts):                 # prefix pass: pull from lower lanes
        ok = masks_ref[k + i:k + i + 1, :] > 0.5
        m = jnp.where(ok, jnp.maximum(m, _shift_lanes(m, -s)), m)

    # vectorized grouped softmax: one exp pass, group sums via block-diagonal ones matmul.
    e = jnp.exp(z - m)
    denom = jnp.dot(e, gsum_ref[...], preferred_element_type=jnp.float32)   # >= 1 everywhere
    p = e / denom

    # mixture with the static matrices and log() — one full-width pass.
    mixp = statmix_ref[...] + wmix_ref[...] * p
    logmix = jnp.log(mixp)
    lt_ref[...] = logmix[:, :HH]
    le_ref[...] = logmix[:, HH:]

    # emission evidence: ev_h = sum_s log( sum_o mix_emiss[s,h,o] * obs[s,o] )
    # (identical to lse(log_emiss + log_obs) of the reference, computed in prob space).
    obs_exp = jnp.dot(obs_ref[...], robs_ref[...], preferred_element_type=jnp.float32)
    dots = jnp.dot(mixp[:, HH:] * obs_exp, gev_ref[...],
                   preferred_element_type=jnp.float32)
    lev_ref[...] = jnp.dot(jnp.log(dots), msh_ref[...],
                           preferred_element_type=jnp.float32)


def run_nn_mix(x, obs2d, w_fused, b_fused, statmix, wmix, roll_masks, gsum,
               robs, gev, msh, *, H, HH, SHO, shifts, tile_n, vmem_limit):
    Np, E = x.shape
    kernel = functools.partial(_nn_mix_kernel, HH=HH, shifts=shifts)

    def row_spec(w):
        return pl.BlockSpec((tile_n, w), lambda i: (i, 0))

    def full_spec(shape):
        nd = len(shape)
        return pl.BlockSpec(shape, lambda i, _n=nd: (0,) * _n)

    return pl.pallas_call(
        kernel,
        grid=(Np // tile_n,),
        in_specs=[row_spec(E), row_spec(obs2d.shape[1]),
                  full_spec(w_fused.shape), full_spec(b_fused.shape),
                  full_spec(statmix.shape), full_spec(wmix.shape),
                  full_spec(roll_masks.shape), full_spec(gsum.shape),
                  full_spec(robs.shape), full_spec(gev.shape),
                  full_spec(msh.shape)],
        out_specs=(row_spec(HH), row_spec(SHO), row_spec(H)),
        out_shape=(jax.ShapeDtypeStruct((Np, HH), jnp.float32),
                   jax.ShapeDtypeStruct((Np, SHO), jnp.float32),
                   jax.ShapeDtypeStruct((Np, H), jnp.float32)),
        compiler_params=pltpu.CompilerParams(
            dimension_semantics=("parallel",),
            vmem_limit_bytes=vmem_limit),
    )(x, obs2d, w_fused, b_fused, statmix, wmix, roll_masks, gsum, robs, gev, msh)


# ============================================================================ kernel 2
# Fused forward/backward recursion + expected complete log-likelihood.
# TB sequences per grid step; alpha/beta live only in VMEM scratch.
def _fb_ll_kernel(lens_ref, ev_ref, trans_ref, prior_ref, out_ref, a_sc, b_sc,
                  *, L, H, TB, TC):
    b0 = pl.program_id(0) * TB
    lens_sc = [lens_ref[b0 + b] for b in range(TB)]
    len_vec = jnp.concatenate(
        [jnp.full((1, 1, 1), lens_sc[b], jnp.int32) for b in range(TB)], axis=0)

    prior = prior_ref[...]                                    # (1, H)

    # ---- forward recursion (normalized log-alpha); alpha stored shifted by +1 so that
    #      a_sc[:, t, :] == alpha[t-1] (row 0 is a zero "alpha[-1]" slot, masked later).
    a_sc[:, 0:1, :] = jnp.zeros((TB, 1, H), jnp.float32)
    ev0 = ev_ref[:, 0:1, :].reshape(TB, H)
    a0 = prior + ev0
    a0 = a0 - _lse_keep(a0)
    a_sc[:, 1:2, :] = a0.reshape(TB, 1, H)

    def fwd(t, a_prev):                                       # a_prev: (TB, H) over j
        tt = trans_ref[:, pl.ds(t, 1), :, :].reshape(TB, H, H)
        ev_t = ev_ref[:, pl.ds(t, 1), :].reshape(TB, H)
        s = a_prev[:, :, None] + tt                           # (TB, H, H): s[b, j, k]
        mm = jnp.max(s, axis=1, keepdims=True)                # reduce over j (sublanes)
        lse = mm + jnp.log(jnp.sum(jnp.exp(s - mm), axis=1, keepdims=True))
        a_t = ev_t + lse.reshape(TB, H)
        a_t = a_t - _lse_keep(a_t)
        # TODO(synk): accumulate 8 timesteps in registers and store (8, H) blocks to cut
        # masked partial-store traffic (matters most on v5e's single store slot).
        a_sc[:, pl.ds(t + 1, 1), :] = a_t.reshape(TB, 1, H)
        return a_t

    lax.fori_loop(1, L, fwd, a0)

    # ---- backward recursion; beta written at its torch.roll()'ed per-sequence position.
    for b in range(TB):
        b_sc[b, pl.ds(lens_sc[b] - 1, 1), :] = jnp.zeros((1, H), jnp.float32)

    def bwd(i, b_next):                                       # b_next: (TB, H) over k
        t = L - 2 - i
        tt = trans_ref[:, pl.ds(t, 1), :, :].reshape(TB, H, H)
        ev_t = ev_ref[:, pl.ds(t, 1), :].reshape(TB, H)       # reference uses ev[t] here
        v = ev_t + b_next
        s = tt + v[:, None, :]                                # (TB, H, H)
        mm = jnp.max(s, axis=2, keepdims=True)                # reduce over k (lanes)
        b_t = (mm + jnp.log(jnp.sum(jnp.exp(s - mm), axis=2, keepdims=True))
               ).reshape(TB, H)
        for b in range(TB):
            pos = t + lens_sc[b]
            pos = jnp.where(pos >= L, pos - L, pos)
            b_sc[b, pl.ds(pos, 1), :] = b_t[b:b + 1, :]
        return b_t

    if L > 1:
        lax.fori_loop(0, L - 1, bwd, jnp.zeros((TB, H), jnp.float32))

    # ---- gamma / xi reductions on the VMEM-resident blocks, time-chunked ----
    emis_acc = jnp.zeros((TB, 1), jnp.float32)
    tran_acc = jnp.zeros((TB, 1), jnp.float32)
    prior_acc = jnp.zeros((TB, 1), jnp.float32)

    for r0 in range(0, L, TC):
        tc = min(TC, L - r0)
        al = a_sc[:, r0 + 1:r0 + 1 + tc, :]                   # alpha[t]
        ap = a_sc[:, r0:r0 + tc, :]                           # alpha[t-1]
        be = b_sc[:, r0:r0 + tc, :]                           # beta (pre-rolled)
        evc = ev_ref[:, r0:r0 + tc, :]
        trc = trans_ref[:, r0:r0 + tc, :, :]                  # (TB, tc, H, H)

        tvec = lax.broadcasted_iota(jnp.int32, (TB, tc, 1), 1) + r0
        valid = tvec < len_vec                                # t < seq_length

        # gamma / emission term and prior term (gamma at t = 0)
        g = al + be
        mg = jnp.max(g, axis=-1, keepdims=True)
        pg = jnp.exp(g - mg)
        pg = pg / jnp.sum(pg, axis=-1, keepdims=True)
        emis = jnp.sum(pg * evc, axis=-1, keepdims=True)      # (TB, tc, 1)
        emis_acc = emis_acc + jnp.sum(jnp.where(valid, emis, 0.0), axis=1)
        if r0 == 0:
            prior_acc = prior_acc + jnp.sum(pg[:, 0:1, :] * prior, axis=-1)

        # xi / transition term (factored, numerically equivalent form)
        w = evc + be                                          # (TB, tc, H) over k
        s3 = trc + w[:, :, None, :]                           # (TB, tc, H, H)
        c3 = jnp.max(s3, axis=-1, keepdims=True)
        p3 = jnp.exp(s3 - c3)
        sp = jnp.sum(p3, axis=-1)                             # (TB, tc, H)
        gn = jnp.sum(p3 * trc, axis=-1)                       # (TB, tc, H)
        c2 = c3.reshape(TB, tc, H)
        q = ap + c2 + jnp.log(sp)                             # = alpha[t-1] + lse_k(.)
        mq = jnp.max(q, axis=-1, keepdims=True)
        l2 = mq + jnp.log(jnp.sum(jnp.exp(q - mq), axis=-1, keepdims=True))
        tr = jnp.sum(jnp.exp(ap + c2 - l2) * gn, axis=-1, keepdims=True)
        xi_valid = jnp.logical_and(valid, tvec >= 1)          # 1 <= t <= len-1
        tran_acc = tran_acc + jnp.sum(jnp.where(xi_valid, tr, 0.0), axis=1)

    total = jnp.sum(prior_acc + tran_acc + emis_acc, keepdims=True)   # (1, 1)
    row = lax.broadcasted_iota(jnp.int32, (8, 128), 0)
    col = lax.broadcasted_iota(jnp.int32, (8, 128), 1)
    out_ref[0] = jnp.where(jnp.logical_and(row == 0, col == 0), total, 0.0)


def run_fused_fb_ll(seq_lengths, ev, trans, prior2, *, tb, tc, vmem_limit):
    B, L, H = ev.shape
    nb = B // tb
    kernel = functools.partial(_fb_ll_kernel, L=L, H=H, TB=tb, TC=tc)
    gs = pltpu.PrefetchScalarGridSpec(
        num_scalar_prefetch=1, grid=(nb,),
        in_specs=[pl.BlockSpec((tb, L, H), lambda i, lens: (i, 0, 0)),
                  pl.BlockSpec((tb, L, H, H), lambda i, lens: (i, 0, 0, 0)),
                  pl.BlockSpec((1, H), lambda i, lens: (0, 0))],
        out_specs=pl.BlockSpec((1, 8, 128), lambda i, lens: (i, 0, 0)),
        scratch_shapes=[pltpu.VMEM((tb, L + 1, H), jnp.float32),
                        pltpu.VMEM((tb, L, H), jnp.float32)],
    )
    out = pl.pallas_call(
        kernel, grid_spec=gs,
        out_shape=jax.ShapeDtypeStruct((nb, 8, 128), jnp.float32),
        compiler_params=pltpu.CompilerParams(
            dimension_semantics=("parallel",),
            vmem_limit_bytes=vmem_limit),
    )(seq_lengths, ev, trans, prior2)
    return jnp.sum(out) / B


# ============================================================================ CHMM forward
def chmm_forward(params, emb, obs, seq_lengths, *, normalize_observation=True,
                 temperature=1.0, trans_weight=0.5, emiss_weight=0.5):
    B, L, S, O = obs.shape
    E = emb.shape[-1]
    H = params["unnorm_trans"].shape[0]
    HH, SHO = H * H, S * H * O
    Wt = HH + SHO
    N = B * L
    inv_t = 1.0 / float(temperature)

    vmem_cap = _vmem_capacity_bytes()
    vmem_limit = int(min(vmem_cap * 3 // 4, 100 * 1024 * 1024))
    budget = vmem_limit // 2

    # --- static (parameter) matrices: glue ---
    log_state_priors = jax.nn.log_softmax(params["state_priors"] * inv_t)
    trans_static = jax.nn.softmax(params["unnorm_trans"] * inv_t, axis=-1)     # (H, H)
    emiss_static = jax.nn.softmax(params["unnorm_emiss"] * inv_t, axis=-1)     # (S, H, O)

    # --- observation normalization (mirrors the reference boolean substitution) ---
    if normalize_observation:
        lbs = jnp.argmax(obs, axis=-1)
        entity_idx = jnp.sum(lbs, axis=-1) > 1e-6
        no_entity_idx = lbs <= 1e-6
        no_obs_src = entity_idx[:, :, None] & no_entity_idx
        subst = jnp.full((O,), 0.99 / O, obs.dtype).at[0].set(0.01)
        obs = jnp.where(no_obs_src[..., None], subst, obs)

    # --- K1 host prep: fused weights/bias (1/temperature folded in), mixture rows,
    #     segmented-softmax masks and 0/1 indicator matmul matrices ---
    w_fused = (jnp.concatenate(
        [params["w_trans"],
         jnp.transpose(params["w_emiss"], (1, 0, 2)).reshape(E, SHO)],
        axis=1) * inv_t).astype(jnp.bfloat16)                                   # (E, Wt)
    b_fused = (jnp.concatenate(
        [params["b_trans"].reshape(HH), params["b_emiss"].reshape(SHO)]) * inv_t
               ).reshape(1, Wt).astype(jnp.float32)
    statmix = jnp.concatenate(
        [(1.0 - trans_weight) * trans_static.reshape(HH),
         (1.0 - emiss_weight) * emiss_static.reshape(SHO)]
    ).reshape(1, Wt).astype(jnp.float32)
    wmix = jnp.concatenate(
        [jnp.full((HH,), trans_weight, jnp.float32),
         jnp.full((SHO,), emiss_weight, jnp.float32)]).reshape(1, Wt)

    gid = np.concatenate([np.arange(HH) // H, H + np.arange(SHO) // O])
    shifts = []
    sh = 1
    while sh < max(H, O):
        shifts.append(sh)
        sh *= 2
    mask_rows = [(np.roll(gid, -s) == gid) for s in shifts] + \
                [(np.roll(gid, s) == gid) for s in shifts]
    if not mask_rows:
        mask_rows = [np.ones((Wt,), bool)]
    roll_masks = jnp.asarray(np.stack(mask_rows).astype(np.float32))
    gsum = jnp.asarray((gid[None, :] == gid[:, None]).astype(np.float32))       # (Wt, Wt)
    robs_np = np.zeros((S * O, SHO), np.float32)
    gev_np = np.zeros((SHO, S * H), np.float32)
    msh_np = np.zeros((S * H, H), np.float32)
    for s_ in range(S):
        for h in range(H):
            for o in range(O):
                robs_np[s_ * O + o, s_ * H * O + h * O + o] = 1.0
                gev_np[s_ * H * O + h * O + o, s_ * H + h] = 1.0
            msh_np[s_ * H + h, h] = 1.0
    robs, gev, msh = jnp.asarray(robs_np), jnp.asarray(gev_np), jnp.asarray(msh_np)

    # --- kernel 1: neural module + mixture + evidence (row-tiled over N = B*L) ---
    tile_n = _pick_tile_n(N, E, S, H, O, budget)
    Np = _round_up(N, tile_n)
    x = emb.reshape(N, E).astype(jnp.bfloat16)                 # bf16 input halves K1 DMA
    obs2d = obs.reshape(N, S * O).astype(jnp.float32)
    if Np != N:
        x = jnp.pad(x, ((0, Np - N), (0, 0)))
        obs2d = jnp.pad(obs2d, ((0, Np - N), (0, 0)), constant_values=1.0 / O)

    lt, le, lev = run_nn_mix(x, obs2d, w_fused, b_fused, statmix, wmix, roll_masks,
                             gsum, robs, gev, msh, H=H, HH=HH, SHO=SHO,
                             shifts=tuple(shifts), tile_n=tile_n, vmem_limit=vmem_limit)
    log_trans = lt[:N].reshape(B, L, H, H)         # free reshapes (row-major compatible)
    log_emiss = le[:N].reshape(B, L, S, H, O)
    log_ev = lev[:N].reshape(B, L, H)

    # --- fused kernel 2: forward-backward + expected complete log-likelihood ---
    prior2 = log_state_priors.reshape(1, H).astype(jnp.float32)
    seq_lengths = seq_lengths.astype(jnp.int32)
    tc = min(L, 64)
    tb = _pick_tb(B, L, H, tc, budget)
    ll = run_fused_fb_ll(seq_lengths, log_ev, log_trans, prior2,
                         tb=tb, tc=tc, vmem_limit=vmem_limit)
    return ll, (log_trans, log_emiss)


# ============================================================================ main
if __name__ == "__main__":
    B, L, E, H, S, O = 2, 16, 32, 8, 3, 8
    TRANS_W, EMISS_W, TEMP = 0.5, 0.5, 1.0

    key = jax.random.PRNGKey(0)
    k_trans, k_wt, k_bt, k_we, k_be, k_in = jax.random.split(key, 6)

    # ---- deterministic parameter init (mirrors CHMM.__init__ shapes) ----
    priors = jnp.full((H,), 0.001, jnp.float32).at[0].set(1.0)
    state_priors = jnp.log(priors)
    unnorm_trans = jax.random.normal(k_trans, (H, H), jnp.float32)
    unnorm_emiss = jnp.zeros((S, H, O), jnp.float32)

    gain = math.sqrt(2.0)                               # calculate_gain('relu')
    bound_t = gain * math.sqrt(6.0 / (H * H + E))
    w_trans = jax.random.uniform(k_wt, (E, H * H), jnp.float32, -bound_t, bound_t)
    b_bound = 1.0 / math.sqrt(E)
    b_trans = jax.random.uniform(k_bt, (H * H,), jnp.float32, -b_bound, b_bound)
    bound_e = gain * math.sqrt(6.0 / (H * O + E))
    w_emiss = jax.random.uniform(k_we, (S, E, H * O), jnp.float32, -bound_e, bound_e)
    b_emiss = jax.random.uniform(k_be, (S, H * O), jnp.float32, -b_bound, b_bound)

    params = dict(state_priors=state_priors, unnorm_trans=unnorm_trans,
                  unnorm_emiss=unnorm_emiss, w_trans=w_trans, b_trans=b_trans,
                  w_emiss=w_emiss, b_emiss=b_emiss)

    # ---- deterministic inputs ----
    k_emb, k_obs = jax.random.split(k_in)
    emb = jax.random.normal(k_emb, (B, L, E), jnp.float32)
    obs = jax.nn.softmax(2.0 * jax.random.normal(k_obs, (B, L, S, O), jnp.float32), axis=-1)
    seq_lengths = jnp.array([L, L - 3], jnp.int32)

    ll, (log_trans, log_emiss) = chmm_forward(
        params, emb, obs, seq_lengths,
        normalize_observation=True, temperature=TEMP,
        trans_weight=TRANS_W, emiss_weight=EMISS_W)
    jax.block_until_ready((ll, log_trans, log_emiss))

    assert log_trans.shape == (B, L, H, H)
    assert log_emiss.shape == (B, L, S, H, O)
    assert bool(jnp.isfinite(ll))
    assert bool(jnp.all(jnp.isfinite(log_trans)))
    assert bool(jnp.all(jnp.isfinite(log_emiss)))
    print("KERNEL_OK")
</pallas_src>

<mosaic_0001>
module attributes {stable_mosaic.version = 11 : i64} {
  func.func @_nn_mix_kernel(%arg0: i32, %arg1: memref<32x32xbf16, #tpu.memory_space<vmem>>, %arg2: memref<32x24xf32, #tpu.memory_space<vmem>>, %arg3: memref<32x256xbf16, #tpu.memory_space<vmem>>, %arg4: memref<1x256xf32, #tpu.memory_space<vmem>>, %arg5: memref<1x256xf32, #tpu.memory_space<vmem>>, %arg6: memref<1x256xf32, #tpu.memory_space<vmem>>, %arg7: memref<6x256xf32, #tpu.memory_space<vmem>>, %arg8: memref<256x256xf32, #tpu.memory_space<vmem>>, %arg9: memref<24x192xf32, #tpu.memory_space<vmem>>, %arg10: memref<192x24xf32, #tpu.memory_space<vmem>>, %arg11: memref<24x8xf32, #tpu.memory_space<vmem>>, %arg12: memref<32x64xf32, #tpu.memory_space<vmem>>, %arg13: memref<32x192xf32, #tpu.memory_space<vmem>>, %arg14: memref<32x8xf32, #tpu.memory_space<vmem>>) attributes {dimension_semantics = [#tpu.dimension_semantics<parallel>], iteration_bounds = array<i64: 1>, scalar_prefetch = 0 : i64, scratch_operands = 0 : i64, tpu.core_type = #tpu.core_type<tc>, window_params = [{transform_indices = @transform_0, window_bounds = array<i64: 32, 32>}, {transform_indices = @transform_1, window_bounds = array<i64: 32, 24>}, {pipeline_mode = #tpu.pipeline_mode<synchronous>, transform_indices = @transform_2, window_bounds = array<i64: 32, 256>}, {pipeline_mode = #tpu.pipeline_mode<synchronous>, transform_indices = @transform_3, window_bounds = array<i64: 1, 256>}, {pipeline_mode = #tpu.pipeline_mode<synchronous>, transform_indices = @transform_4, window_bounds = array<i64: 1, 256>}, {pipeline_mode = #tpu.pipeline_mode<synchronous>, transform_indices = @transform_5, window_bounds = array<i64: 1, 256>}, {pipeline_mode = #tpu.pipeline_mode<synchronous>, transform_indices = @transform_6, window_bounds = array<i64: 6, 256>}, {pipeline_mode = #tpu.pipeline_mode<synchronous>, transform_indices = @transform_7, window_bounds = array<i64: 256, 256>}, {pipeline_mode = #tpu.pipeline_mode<synchronous>, transform_indices = @transform_8, window_bounds = array<i64: 24, 192>}, {pipeline_mode = #tpu.pipeline_mode<synchronous>, transform_indices = @transform_9, window_bounds = array<i64: 192, 24>}, {pipeline_mode = #tpu.pipeline_mode<synchronous>, transform_indices = @transform_10, window_bounds = array<i64: 24, 8>}, {transform_indices = @transform_11, window_bounds = array<i64: 32, 64>}, {transform_indices = @transform_12, window_bounds = array<i64: 32, 192>}, {transform_indices = @transform_13, window_bounds = array<i64: 32, 8>}]} {
    %c0 = arith.constant 0 : index
    %c0_0 = arith.constant 0 : index
    %0 = vector.load %arg1[%c0, %c0_0] : memref<32x32xbf16, #tpu.memory_space<vmem>>, vector<32x32xbf16>
    %c0_1 = arith.constant 0 : index
    %c0_2 = arith.constant 0 : index
    %1 = vector.load %arg3[%c0_1, %c0_2] : memref<32x256xbf16, #tpu.memory_space<vmem>>, vector<32x256xbf16>
    %cst = arith.constant dense<0.000000e+00> : vector<32x256xf32>
    %2 = tpu.matmul %0, %1, %cst {dimension_numbers = #tpu.dot_dimension_numbers<[1], [0], [0], [1], [0, 0, 1, 1], [], []>} : vector<32x32xbf16>, vector<32x256xbf16>, vector<32x256xf32> -> vector<32x256xf32>
    %c0_3 = arith.constant 0 : index
    %c0_4 = arith.constant 0 : index
    %3 = vector.load %arg4[%c0_3, %c0_4] : memref<1x256xf32, #tpu.memory_space<vmem>>, vector<1x256xf32>
    %4 = vector.broadcast %3 : vector<1x256xf32> to vector<32x256xf32>
    %5 = arith.addf %2, %4 : vector<32x256xf32>
    %c0_5 = arith.constant 0 : index
    %c0_6 = arith.constant 0 : index
    %6 = vector.load %arg7[%c0_5, %c0_6] : memref<6x256xf32, #tpu.memory_space<vmem>>, vector<1x256xf32>
    %cst_7 = arith.constant 5.000000e-01 : f32
    %7 = vector.broadcast %cst_7 : f32 to vector<1x256xf32>
    %8 = arith.cmpf ogt, %6, %7 : vector<1x256xf32>
    %9 = vector.extract_strided_slice %5 {offsets = [0, 1], sizes = [32, 255], strides = [1, 1]} : vector<32x256xf32> to vector<32x255xf32>
    %10 = vector.extract_strided_slice %5 {offsets = [0, 0], sizes = [32, 1], strides = [1, 1]} : vector<32x256xf32> to vector<32x1xf32>
    %11 = tpu.concatenate %9, %10 in 1 : vector<32x255xf32>, vector<32x1xf32> -> vector<32x256xf32>
    %12 = arith.maximumf %5, %11 : vector<32x256xf32>
    %13 = vector.shape_cast %8 : vector<1x256xi1> to vector<1x256xi1>
    %14 = vector.broadcast %13 : vector<1x256xi1> to vector<32x256xi1>
    %15 = arith.select %14, %12, %5 : vector<32x256xi1>, vector<32x256xf32>
    %c1 = arith.constant 1 : index
    %c0_8 = arith.constant 0 : index
    %16 = vector.load %arg7[%c1, %c0_8] : memref<6x256xf32, #tpu.memory_space<vmem>>, vector<1x256xf32>
    %cst_9 = arith.constant 5.000000e-01 : f32
    %17 = vector.broadcast %cst_9 : f32 to vector<1x256xf32>
    %18 = arith.cmpf ogt, %16, %17 : vector<1x256xf32>
    %19 = vector.extract_strided_slice %15 {offsets = [0, 2], sizes = [32, 254], strides = [1, 1]} : vector<32x256xf32> to vector<32x254xf32>
    %20 = vector.extract_strided_slice %15 {offsets = [0, 0], sizes = [32, 2], strides = [1, 1]} : vector<32x256xf32> to vector<32x2xf32>
    %21 = tpu.concatenate %19, %20 in 1 : vector<32x254xf32>, vector<32x2xf32> -> vector<32x256xf32>
    %22 = arith.maximumf %15, %21 : vector<32x256xf32>
    %23 = vector.shape_cast %18 : vector<1x256xi1> to vector<1x256xi1>
    %24 = vector.broadcast %23 : vector<1x256xi1> to vector<32x256xi1>
    %25 = arith.select %24, %22, %15 : vector<32x256xi1>, vector<32x256xf32>
    %c2 = arith.constant 2 : index
    %c0_10 = arith.constant 0 : index
    %26 = vector.load %arg7[%c2, %c0_10] : memref<6x256xf32, #tpu.memory_space<vmem>>, vector<1x256xf32>
    %cst_11 = arith.constant 5.000000e-01 : f32
    %27 = vector.broadcast %cst_11 : f32 to vector<1x256xf32>
    %28 = arith.cmpf ogt, %26, %27 : vector<1x256xf32>
    %29 = vector.extract_strided_slice %25 {offsets = [0, 4], sizes = [32, 252], strides = [1, 1]} : vector<32x256xf32> to vector<32x252xf32>
    %30 = vector.extract_strided_slice %25 {offsets = [0, 0], sizes = [32, 4], strides = [1, 1]} : vector<32x256xf32> to vector<32x4xf32>
    %31 = tpu.concatenate %29, %30 in 1 : vector<32x252xf32>, vector<32x4xf32> -> vector<32x256xf32>
    %32 = arith.maximumf %25, %31 : vector<32x256xf32>
    %33 = vector.shape_cast %28 : vector<1x256xi1> to vector<1x256xi1>
    %34 = vector.broadcast %33 : vector<1x256xi1> to vector<32x256xi1>
    %35 = arith.select %34, %32, %25 : vector<32x256xi1>, vector<32x256xf32>
    %c3 = arith.constant 3 : index
    %c0_12 = arith.constant 0 : index
    %36 = vector.load %arg7[%c3, %c0_12] : memref<6x256xf32, #tpu.memory_space<vmem>>, vector<1x256xf32>
    %cst_13 = arith.constant 5.000000e-01 : f32
    %37 = vector.broadcast %cst_13 : f32 to vector<1x256xf32>
    %38 = arith.cmpf ogt, %36, %37 : vector<1x256xf32>
    %39 = vector.extract_strided_slice %35 {offsets = [0, 255], sizes = [32, 1], strides = [1, 1]} : vector<32x256xf32> to vector<32x1xf32>
    %40 = vector.extract_strided_slice %35 {offsets = [0, 0], sizes = [32, 255], strides = [1, 1]} : vector<32x256xf32> to vector<32x255xf32>
    %41 = tpu.concatenate %39, %40 in 1 : vector<32x1xf32>, vector<32x255xf32> -> vector<32x256xf32>
    %42 = arith.maximumf %35, %41 : vector<32x256xf32>
    %43 = vector.shape_cast %38 : vector<1x256xi1> to vector<1x256xi1>
    %44 = vector.broadcast %43 : vector<1x256xi1> to vector<32x256xi1>
    %45 = arith.select %44, %42, %35 : vector<32x256xi1>, vector<32x256xf32>
    %c4 = arith.constant 4 : index
    %c0_14 = arith.constant 0 : index
    %46 = vector.load %arg7[%c4, %c0_14] : memref<6x256xf32, #tpu.memory_space<vmem>>, vector<1x256xf32>
    %cst_15 = arith.constant 5.000000e-01 : f32
    %47 = vector.broadcast %cst_15 : f32 to vector<1x256xf32>
    %48 = arith.cmpf ogt, %46, %47 : vector<1x256xf32>
    %49 = vector.extract_strided_slice %45 {offsets = [0, 254], sizes = [32, 2], strides = [1, 1]} : vector<32x256xf32> to vector<32x2xf32>
    %50 = vector.extract_strided_slice %45 {offsets = [0, 0], sizes = [32, 254], strides = [1, 1]} : vector<32x256xf32> to vector<32x254xf32>
    %51 = tpu.concatenate %49, %50 in 1 : vector<32x2xf32>, vector<32x254xf32> -> vector<32x256xf32>
    %52 = arith.maximumf %45, %51 : vector<32x256xf32>
    %53 = vector.shape_cast %48 : vector<1x256xi1> to vector<1x256xi1>
    %54 = vector.broadcast %53 : vector<1x256xi1> to vector<32x256xi1>
    %55 = arith.select %54, %52, %45 : vector<32x256xi1>, vector<32x256xf32>
    %c5 = arith.constant 5 : index
    %c0_16 = arith.constant 0 : index
    %56 = vector.load %arg7[%c5, %c0_16] : memref<6x256xf32, #tpu.memory_space<vmem>>, vector<1x256xf32>
    %cst_17 = arith.constant 5.000000e-01 : f32
    %57 = vector.broadcast %cst_17 : f32 to vector<1x256xf32>
    %58 = arith.cmpf ogt, %56, %57 : vector<1x256xf32>
    %59 = vector.extract_strided_slice %55 {offsets = [0, 252], sizes = [32, 4], strides = [1, 1]} : vector<32x256xf32> to vector<32x4xf32>
    %60 = vector.extract_strided_slice %55 {offsets = [0, 0], sizes = [32, 252], strides = [1, 1]} : vector<32x256xf32> to vector<32x252xf32>
    %61 = tpu.concatenate %59, %60 in 1 : vector<32x4xf32>, vector<32x252xf32> -> vector<32x256xf32>
    %62 = arith.maximumf %55, %61 : vector<32x256xf32>
    %63 = vector.shape_cast %58 : vector<1x256xi1> to vector<1x256xi1>
    %64 = vector.broadcast %63 : vector<1x256xi1> to vector<32x256xi1>
    %65 = arith.select %64, %62, %55 : vector<32x256xi1>, vector<32x256xf32>
    %66 = arith.subf %5, %65 : vector<32x256xf32>
    %67 = math.exp %66 : vector<32x256xf32>
    %c0_18 = arith.constant 0 : index
    %c0_19 = arith.constant 0 : index
    %68 = vector.load %arg8[%c0_18, %c0_19] : memref<256x256xf32, #tpu.memory_space<vmem>>, vector<256x256xf32>
    %cst_20 = arith.constant dense<0.000000e+00> : vector<32x256xf32>
    %69 = tpu.matmul %67, %68, %cst_20 {dimension_numbers = #tpu.dot_dimension_numbers<[1], [0], [0], [1], [0, 0, 1, 1], [], []>} : vector<32x256xf32>, vector<256x256xf32>, vector<32x256xf32> -> vector<32x256xf32>
    %70 = arith.divf %67, %69 : vector<32x256xf32>
    %c0_21 = arith.constant 0 : index
    %c0_22 = arith.constant 0 : index
    %71 = vector.load %arg5[%c0_21, %c0_22] : memref<1x256xf32, #tpu.memory_space<vmem>>, vector<1x256xf32>
    %c0_23 = arith.constant 0 : index
    %c0_24 = arith.constant 0 : index
    %72 = vector.load %arg6[%c0_23, %c0_24] : memref<1x256xf32, #tpu.memory_space<vmem>>, vector<1x256xf32>
    %73 = vector.broadcast %72 : vector<1x256xf32> to vector<32x256xf32>
    %74 = arith.mulf %73, %70 : vector<32x256xf32>
    %75 = vector.broadcast %71 : vector<1x256xf32> to vector<32x256xf32>
    %76 = arith.addf %75, %74 : vector<32x256xf32>
    %77 = math.log %76 : vector<32x256xf32>
    %78 = vector.extract_strided_slice %77 {offsets = [0, 0], sizes = [32, 64], strides = [1, 1]} : vector<32x256xf32> to vector<32x64xf32>
    %c0_25 = arith.constant 0 : index
    %c0_26 = arith.constant 0 : index
    %79 = vector.load %arg12[%c0_25, %c0_26] : memref<32x64xf32, #tpu.memory_space<vmem>>, vector<32x64xf32>
    tpu.vector_store %arg12[%c0_25, %c0_26], %78 {strides = array<i32>} : memref<32x64xf32, #tpu.memory_space<vmem>>, vector<32x64xf32>,
    %80 = vector.extract_strided_slice %77 {offsets = [0, 64], sizes = [32, 192], strides = [1, 1]} : vector<32x256xf32> to vector<32x192xf32>
    %c0_27 = arith.constant 0 : index
    %c0_28 = arith.constant 0 : index
    %81 = vector.load %arg13[%c0_27, %c0_28] : memref<32x192xf32, #tpu.memory_space<vmem>>, vector<32x192xf32>
    tpu.vector_store %arg13[%c0_27, %c0_28], %80 {strides = array<i32>} : memref<32x192xf32, #tpu.memory_space<vmem>>, vector<32x192xf32>,
    %c0_29 = arith.constant 0 : index
    %c0_30 = arith.constant 0 : index
    %82 = vector.load %arg2[%c0_29, %c0_30] : memref<32x24xf32, #tpu.memory_space<vmem>>, vector<32x24xf32>
    %c0_31 = arith.constant 0 : index
    %c0_32 = arith.constant 0 : index
    %83 = vector.load %arg9[%c0_31, %c0_32] : memref<24x192xf32, #tpu.memory_space<vmem>>, vector<24x192xf32>
    %cst_33 = arith.constant dense<0.000000e+00> : vector<32x192xf32>
    %84 = tpu.matmul %82, %83, %cst_33 {dimension_numbers = #tpu.dot_dimension_numbers<[1], [0], [0], [1], [0, 0, 1, 1], [], []>} : vector<32x24xf32>, vector<24x192xf32>, vector<32x192xf32> -> vector<32x192xf32>
    %85 = vector.extract_strided_slice %76 {offsets = [0, 64], sizes = [32, 192], strides = [1, 1]} : vector<32x256xf32> to vector<32x192xf32>
    %86 = arith.mulf %85, %84 : vector<32x192xf32>
    %c0_34 = arith.constant 0 : index
    %c0_35 = arith.constant 0 : index
    %87 = vector.load %arg10[%c0_34, %c0_35] : memref<192x24xf32, #tpu.memory_space<vmem>>, vector<192x24xf32>
    %cst_36 = arith.constant dense<0.000000e+00> : vector<32x24xf32>
    %88 = tpu.matmul %86, %87, %cst_36 {dimension_numbers = #tpu.dot_dimension_numbers<[1], [0], [0], [1], [0, 0, 1, 1], [], []>} : vector<32x192xf32>, vector<192x24xf32>, vector<32x24xf32> -> vector<32x24xf32>
    %89 = math.log %88 : vector<32x24xf32>
    %c0_37 = arith.constant 0 : index
    %c0_38 = arith.constant 0 : index
    %90 = vector.load %arg11[%c0_37, %c0_38] : memref<24x8xf32, #tpu.memory_space<vmem>>, vector<24x8xf32>
    %cst_39 = arith.constant dense<0.000000e+00> : vector<32x8xf32>
    %91 = tpu.matmul %89, %90, %cst_39 {dimension_numbers = #tpu.dot_dimension_numbers<[1], [0], [0], [1], [0, 0, 1, 1], [], []>} : vector<32x24xf32>, vector<24x8xf32>, vector<32x8xf32> -> vector<32x8xf32>
    %c0_40 = arith.constant 0 : index
    %c0_41 = arith.constant 0 : index
    %92 = vector.load %arg14[%c0_40, %c0_41] : memref<32x8xf32, #tpu.memory_space<vmem>>, vector<32x8xf32>
    tpu.vector_store %arg14[%c0_40, %c0_41], %91 {strides = array<i32>} : memref<32x8xf32, #tpu.memory_space<vmem>>, vector<32x8xf32>,
    return
  }
  func.func @transform_0(%arg0: i32) -> (i32, i32) {
    %c0_i32 = arith.constant 0 : i32
    %c0_i32_0 = arith.constant 0 : i32
    return %arg0, %c0_i32 : i32, i32
  }
  func.func @transform_1(%arg0: i32) -> (i32, i32) {
    %c0_i32 = arith.constant 0 : i32
    %c0_i32_0 = arith.constant 0 : i32
    return %arg0, %c0_i32 : i32, i32
  }
  func.func @transform_2(%arg0: i32) -> (i32, i32) {
    %c0_i32 = arith.constant 0 : i32
    %c0_i32_0 = arith.constant 0 : i32
    %c0_i32_1 = arith.constant 0 : i32
    return %c0_i32, %c0_i32_0 : i32, i32
  }
  func.func @transform_3(%arg0: i32) -> (i32, i32) {
    %c0_i32 = arith.constant 0 : i32
    %c0_i32_0 = arith.constant 0 : i32
    %c0_i32_1 = arith.constant 0 : i32
    return %c0_i32, %c0_i32_0 : i32, i32
  }
  func.func @transform_4(%arg0: i32) -> (i32, i32) {
    %c0_i32 = arith.constant 0 : i32
    %c0_i32_0 = arith.constant 0 : i32
    %c0_i32_1 = arith.constant 0 : i32
    return %c0_i32, %c0_i32_0 : i32, i32
  }
  func.func @transform_5(%arg0: i32) -> (i32, i32) {
    %c0_i32 = arith.constant 0 : i32
    %c0_i32_0 = arith.constant 0 : i32
    %c0_i32_1 = arith.constant 0 : i32
    return %c0_i32, %c0_i32_0 : i32, i32
  }
  func.func @transform_6(%arg0: i32) -> (i32, i32) {
    %c0_i32 = arith.constant 0 : i32
    %c0_i32_0 = arith.constant 0 : i32
    %c0_i32_1 = arith.constant 0 : i32
    return %c0_i32, %c0_i32_0 : i32, i32
  }
  func.func @transform_7(%arg0: i32) -> (i32, i32) {
    %c0_i32 = arith.constant 0 : i32
    %c0_i32_0 = arith.constant 0 : i32
    %c0_i32_1 = arith.constant 0 : i32
    return %c0_i32, %c0_i32_0 : i32, i32
  }
  func.func @transform_8(%arg0: i32) -> (i32, i32) {
    %c0_i32 = arith.constant 0 : i32
    %c0_i32_0 = arith.constant 0 : i32
    %c0_i32_1 = arith.constant 0 : i32
    return %c0_i32, %c0_i32_0 : i32, i32
  }
  func.func @transform_9(%arg0: i32) -> (i32, i32) {
    %c0_i32 = arith.constant 0 : i32
    %c0_i32_0 = arith.constant 0 : i32
    %c0_i32_1 = arith.constant 0 : i32
    return %c0_i32, %c0_i32_0 : i32, i32
  }
  func.func @transform_10(%arg0: i32) -> (i32, i32) {
    %c0_i32 = arith.constant 0 : i32
    %c0_i32_0 = arith.constant 0 : i32
    %c0_i32_1 = arith.constant 0 : i32
    return %c0_i32, %c0_i32_0 : i32, i32
  }
  func.func @transform_11(%arg0: i32) -> (i32, i32) {
    %c0_i32 = arith.constant 0 : i32
    %c0_i32_0 = arith.constant 0 : i32
    return %arg0, %c0_i32 : i32, i32
  }
  func.func @transform_12(%arg0: i32) -> (i32, i32) {
    %c0_i32 = arith.constant 0 : i32
    %c0_i32_0 = arith.constant 0 : i32
    return %arg0, %c0_i32 : i32, i32
  }
  func.func @transform_13(%arg0: i32) -> (i32, i32) {
    %c0_i32 = arith.constant 0 : i32
    %c0_i32_0 = arith.constant 0 : i32
    return %arg0, %c0_i32 : i32, i32
  }
}

</mosaic_0001>

<llo_original>
// kernel: tpu_custom_call.1
$region0: #{tpu_custom_call.1}
  #allocation0 [shape = 'u32[]', space=smem, size = 0x4, offset = 0x4, fixed_abs, tag = 'smem constant byte address 0x4 - core index']
  #allocation1 [shape = 'u32[144,128]{1,0:T(1,128)}', space=vmem, size = 0x12000, scoped, tag = 'internal scratch']
  %s0 = inlined_call_operand.vmem [shape: bf16[32,32], index: 0, kind: input, shape index: {}]
  %s1 = inlined_call_operand.vmem [shape: f32[32,24], index: 1, kind: input, shape index: {}]
  %s2 = inlined_call_operand.vmem [shape: bf16[32,256], index: 2, kind: input, shape index: {}]
  %s3 = inlined_call_operand.vmem [shape: f32[1,256], index: 3, kind: input, shape index: {}]
  %s4 = inlined_call_operand.vmem [shape: f32[1,256], index: 4, kind: input, shape index: {}]
  %s5 = inlined_call_operand.vmem [shape: f32[1,256], index: 5, kind: input, shape index: {}]
  %s6 = inlined_call_operand.vmem [shape: f32[6,256], index: 6, kind: input, shape index: {}]
  %s7 = inlined_call_operand.hbm [shape: f32[256,256], index: 7, kind: input, shape index: {}]
  %s8 = inlined_call_operand.vmem [shape: f32[24,192], index: 8, kind: input, shape index: {}]
  %s9 = inlined_call_operand.vmem [shape: f32[192,24], index: 9, kind: input, shape index: {}]
  %s10 = inlined_call_operand.vmem [shape: f32[24,8], index: 10, kind: input, shape index: {}]
  %s11 = inlined_call_operand.hbm [shape: f32[32,64], index: 11, kind: output, shape index: {0}]
  %s12 = inlined_call_operand.hbm [shape: f32[32,192], index: 12, kind: output, shape index: {1}]
  %s13 = inlined_call_operand.vmem [shape: f32[32,8], index: 13, kind: output, shape index: {2}]
  %14 = xla_tuple %s11, %s12, %s13
  %s15 = sld [smem:[#allocation0]]
  $region74: #{tpu_custom_call.1} parent=0
    _
  %s17 = ssub.s32 1, %s15
  %s18 = scalar_select 0, %s17, %s15
  $region1: #{tpu_custom_call.1} parent=0
    #allocation2 [shape = 'u8[262144]{0}', space=vmem, size = 0x40000, scoped, tag = 'input window, operand 7, single buffered']
    #allocation3 [shape = 's32[1]{0}', space=sflag, size = 0x4, scoped, tag = 'scoped memory for tpu_custom_call.1']
    #allocation4 [shape = 's32[1]{0}', space=sflag, size = 0x4, scoped, tag = 'scoped memory for tpu_custom_call.1']
    #allocation5 [shape = 'u8[16384]{0}', space=vmem, size = 0x4000, scoped, tag = 'output window, operand 0, single buffered']
    #allocation6 [shape = 'u8[32768]{0}', space=vmem, size = 0x8000, scoped, tag = 'output window, operand 1, single buffered']
    #allocation7 [shape = 's32[1]{0}', space=sflag, size = 0x4, scoped, tag = 'scoped memory for tpu_custom_call.1']
    %19 = vsyncpa [#allocation3], 0
    %20 = vsyncpa [#allocation4], 0
    %21 = vsyncpa [#allocation7], 0
    // Predicated region
    $region2: #{tpu_custom_call.1} parent=1 // pred_check
      _
    $region3: #{tpu_custom_call.1} parent=1 // pred_check_branch
      %23 = sbr.rel (0) target = $region5
    $region4: #{tpu_custom_call.1} parent=1 // pred_region
      _
    $region5: #{tpu_custom_call.1} parent=1 // pred_fallthru
      _
    // Predicated region
    $region6: #{tpu_custom_call.1} parent=1 // pred_check
      _
    $region7: #{tpu_custom_call.1} parent=1 // pred_check_branch
      %25 = sbr.rel (0) target = $region9
    $region8: #{tpu_custom_call.1} parent=1 // pred_region
      _
    $region9: #{tpu_custom_call.1} parent=1 // pred_fallthru
      _
    // Predicated region
    $region10: #{tpu_custom_call.1} parent=1 // pred_check
      _
    $region11: #{tpu_custom_call.1} parent=1 // pred_check_branch
      %27 = sbr.rel (0) target = $region13
    $region12: #{tpu_custom_call.1} parent=1 // pred_region
      _
    $region13: #{tpu_custom_call.1} parent=1 // pred_fallthru
      _
    // Predicated region
    $region14: #{tpu_custom_call.1} parent=1 // pred_check
      _
    $region15: #{tpu_custom_call.1} parent=1 // pred_check_branch
      %29 = sbr.rel (0) target = $region17
    $region16: #{tpu_custom_call.1} parent=1 // pred_region
      _
    $region17: #{tpu_custom_call.1} parent=1 // pred_fallthru
      _
    // Predicated region
    $region18: #{tpu_custom_call.1} parent=1 // pred_check
      _
    $region19: #{tpu_custom_call.1} parent=1 // pred_check_branch
      %31 = sbr.rel (0) target = $region21
    $region20: #{tpu_custom_call.1} parent=1 // pred_region
      _
    $region21: #{tpu_custom_call.1} parent=1 // pred_fallthru
      _
    // Predicated region
    $region22: #{tpu_custom_call.1} parent=1 // pred_check
      _
    $region23: #{tpu_custom_call.1} parent=1 // pred_check_branch
      %33 = sbr.rel (0) target = $region25
    $region24: #{tpu_custom_call.1} parent=1 // pred_region
      _
    $region25: #{tpu_custom_call.1} parent=1 // pred_fallthru
      _
    // Predicated region
    $region26: #{tpu_custom_call.1} parent=1 // pred_check
      _
    $region27: #{tpu_custom_call.1} parent=1 // pred_check_branch
      %35 = sbr.rel (0) target = $region29
    $region28: #{tpu_custom_call.1} parent=1 // pred_region
      _
    $region29: #{tpu_custom_call.1} parent=1 // pred_fallthru
      _
    // Predicated region
    $region30: #{tpu_custom_call.1} parent=1 // pred_check
      _
    $region31: #{tpu_custom_call.1} parent=1 // pred_check_branch
      %37 = sbr.rel (0) target = $region33
    $region32: #{tpu_custom_call.1} parent=1 // pred_region
      %s39 = ssub.s32 8192, 8192
      %40 = vsyncadd [#allocation3], %s39
      %s41 = sshll.u32 [#allocation2], 4
      %s42 = int_to_ptr.vmem [resolvable:$true] %s41
      %47 = dma.hbm_to_vmem [thread:$0]  %s7, 8192, %s42, [#allocation3], 256, 256, 16
    $region33: #{tpu_custom_call.1} parent=1 // pred_fallthru
      _
    // Predicated region
    $region34: #{tpu_custom_call.1} parent=1 // pred_check
      _
    $region35: #{tpu_custom_call.1} parent=1 // pred_check_branch
      %49 = sbr.rel (0) target = $region37
    $region36: #{tpu_custom_call.1} parent=1 // pred_region
      _
    $region37: #{tpu_custom_call.1} parent=1 // pred_fallthru
      _
    // Predicated region
    $region38: #{tpu_custom_call.1} parent=1 // pred_check
      _
    $region39: #{tpu_custom_call.1} parent=1 // pred_check_branch
      %51 = sbr.rel (0) target = $region41
    $region40: #{tpu_custom_call.1} parent=1 // pred_region
      _
    $region41: #{tpu_custom_call.1} parent=1 // pred_fallthru
      _
    // Predicated region
    $region42: #{tpu_custom_call.1} parent=1 // pred_check
      _
    $region43: #{tpu_custom_call.1} parent=1 // pred_check_branch
      %53 = sbr.rel (0) target = $region45
    $region44: #{tpu_custom_call.1} parent=1 // pred_region
      _
    $region45: #{tpu_custom_call.1} parent=1 // pred_fallthru
      _
    // Predicated region
    $region46: #{tpu_custom_call.1} parent=1 // pred_check
      _
    $region47: #{tpu_custom_call.1} parent=1 // pred_check_branch
      %55 = sbr.rel (0) target = $region49
    $region48: #{tpu_custom_call.1} parent=1 // pred_region
      %56 = dma.done [#allocation3], 8192
    $region49: #{tpu_custom_call.1} parent=1 // pred_fallthru
      _
    %v58 = vld [vmem:[%s0] sm:$0xf]
    %v59 = vld [vmem:[%s0 + $0x4] sm:$0xf]
    %v60 = vld [vmem:[%s0 + $0x8] sm:$0xf]
    %v61 = vld [vmem:[%s0 + $0xc] sm:$0xf]
    %v62 = vld [vmem:[%s2] sm:$0xff]
    %v63 = vld [vmem:[%s2 + $0x8] sm:$0xff]
    %v64 = vld [vmem:[%s2 + $0x10] sm:$0xff]
    %v65 = vld [vmem:[%s2 + $0x18] sm:$0xff]
    %v66 = vld [vmem:[%s3] sm:$0x3]
    %v68 = vlaneseq
    %v69 = vshrl.u32 %v68, 7
    %v70 = vsub.s32 0, %v69
    %v71 = vrot.slane %v66, %v70
    %v72 = vlaneseq
    %v73 = vshrl.u32 %v72, 7
    %v74 = vsub.s32 1, %v73
    %v75 = vrot.slane %v66, %v74
    %v82 = vunpack.c.l.b16 %v58
    %v83 = vunpack.c.l.b16 %v59
    %v84 = vunpack.c.l.b16 %v60
    %v85 = vunpack.c.l.b16 %v61
    %v86 = vpack.c.b16 %v83, %v82
    %v87 = vpack.c.b16 %v85, %v84
    %v92 = vunpack.c.l.b16 %v62
    %v93 = vunpack.c.h.b16 %v62
    %v94 = vunpack.c.l.b16 %v63
    %v95 = vunpack.c.h.b16 %v63
    %v96 = vunpack.c.l.b16 %v64
    %v97 = vunpack.c.h.b16 %v64
    %v98 = vunpack.c.l.b16 %v65
    %v99 = vunpack.c.h.b16 %v65
    %v100 = vpack.c.b16 %v94, %v92
    %v101 = vpack.c.b16 %v95, %v93
    %v102 = vpack.c.b16 %v98, %v96
    %v103 = vpack.c.b16 %v99, %v97
    %vm108 = vcmask 261120
    %v110 = vsel %vm108, %v86, 0
    %v113 = vsel %vm108, %v87, 0
    %115 = vmatprep.subr.bf16.mxu0 0
    %116 = vmatpush1.bf16.msra.mxu0 0
    %117 = vmatprep.subr.bf16.mxu0 0
    %118 = vmatpush1.bf16.msra.mxu0 0
    %119 = vmatprep.subr.bf16.mxu0 0
    %120 = vmatpush1.bf16.msra.mxu0 0
    %121 = vmatprep.subr.bf16.mxu0 0
    %122 = vmatpush1.bf16.msra.mxu0 0
    %123 = vmatprep.subr.bf16.mxu0 0
    %124 = vmatpush1.bf16.msra.mxu0 0
    %125 = vmatprep.subr.bf16.mxu0 0
    %126 = vmatpush1.bf16.msra.mxu0 0
    %127 = vmatprep.subr.bf16.mxu0 %v103
    %128 = vmatpush1.bf16.msra.mxu0 %v102
    %129 = vmatprep.subr.bf16.mxu0 %v101
    %130 = vmatpush1.bf16.msra.mxu0 %v100
    %131 = vmatprep.subr.bf16.mxu0 0
    %132 = vmatpush2.bf16.msra.mxu0 0
    %133 = vmatprep.subr.bf16.mxu0 0
    %134 = vmatpush2.bf16.msra.mxu0 0
    %135 = vmatprep.subr.bf16.mxu0 0
    %136 = vmatpush2.bf16.msra.mxu0 0
    %137 = vmatprep.subr.bf16.mxu0 0
    %138 = vmatpush2.bf16.msra.mxu0 0
    %139 = vmatprep.subr.bf16.mxu0 0
    %140 = vmatpush2.bf16.msra.mxu0 0
    %141 = vmatprep.subr.bf16.mxu0 0
    %142 = vmatpush2.bf16.msra.mxu0 0
    %143 = vmatprep.subr.bf16.mxu0 0
    %144 = vmatpush2.bf16.msra.mxu0 0
    %145 = vmatprep.subr.bf16.mxu0 0
    %146 = vmatpush2.bf16.msra.mxu0 0
    %147 = vmatprep.mubr.bf16.mxu0 0
    %148 = vmatmul.mubr.bf16.gmra.mxu0 %v110
    %v149 = vpop.f32.mrf.mxu0
    %v150 = vadd.f32 %v71, %v149
    %v151 = vpop.f32.mrf.mxu0
    %v152 = vadd.f32 %v75, %v151
    %v153 = vpop.f32.mrf.mxu0
    %v154 = vadd.f32 %v71, %v153
    %v155 = vpop.f32.mrf.mxu0
    %v156 = vadd.f32 %v75, %v155
    %157 = vmatprep.mubr.bf16.mxu0 0
    %158 = vmatmul.mubr.bf16.gmra.mxu0 %v113
    %v159 = vpop.f32.mrf.mxu0
    %v160 = vadd.f32 %v71, %v159
    %v161 = vpop.f32.mrf.mxu0
    %v162 = vadd.f32 %v75, %v161
    %v163 = vpop.f32.mrf.mxu0
    %v164 = vadd.f32 %v71, %v163
    %v165 = vpop.f32.mrf.mxu0
    %v166 = vadd.f32 %v75, %v165
    %167 = vdwg.mxu0
    %v168 = vld [vmem:[%s6] ss:$8 sm:$0x3]
    %vm169 = vcmp.gt.f32.partialorder %v168, 0.5
    %178 = vrot.lane.b32.xlu0 %v150, 127
    %v179 = vpop.permute.xlu0 %178
    %180 = vrot.lane.b32.xlu0 %v152, 127
    %v181 = vpop.permute.xlu0 %180
    %182 = vrot.lane.b32.xlu0 %v154, 127
    %v183 = vpop.permute.xlu0 %182
    %184 = vrot.lane.b32.xlu0 %v156, 127
    %v185 = vpop.permute.xlu0 %184
    %186 = vrot.lane.b32.xlu0 %v160, 127
    %v187 = vpop.permute.xlu0 %186
    %188 = vrot.lane.b32.xlu0 %v162, 127
    %v189 = vpop.permute.xlu0 %188
    %190 = vrot.lane.b32.xlu0 %v164, 127
    %v191 = vpop.permute.xlu0 %190
    %192 = vrot.lane.b32.xlu0 %v166, 127
    %v193 = vpop.permute.xlu0 %192
    %vm194 = vcmask 1039360
    %v195 = vsel %vm194, %v179, %v181
    %v196 = vsel %vm194, %v183, %v185
    %v197 = vsel %vm194, %v187, %v189
    %v198 = vsel %vm194, %v191, %v193
    %v211 = vsel %vm194, %v181, %v179
    %v212 = vsel %vm194, %v185, %v183
    %v213 = vsel %vm194, %v189, %v187
    %v214 = vsel %vm194, %v193, %v191
    %v215 = vmax.f32 %v150, %v195
    %v216 = vmax.f32 %v152, %v211
    %v217 = vmax.f32 %v154, %v196
    %v218 = vmax.f32 %v156, %v212
    %v219 = vmax.f32 %v160, %v197
    %v220 = vmax.f32 %v162, %v213
    %v221 = vmax.f32 %v164, %v198
    %v222 = vmax.f32 %v166, %v214
    %v223 = vsel %vm169, 1, 0
    %v224 = vlaneseq
    %v225 = vshrl.u32 %v224, 7
    %v226 = vsub.s32 0, %v225
    %v227 = vrot.slane %v223, %v226
    %v228 = vlaneseq
    %v229 = vshrl.u32 %v228, 7
    %v230 = vsub.s32 1, %v229
    %v231 = vrot.slane %v223, %v230
    %vm232 = vcmp.eq.s32.totalorder %v227, 1
    %vm233 = vcmp.eq.s32.totalorder %v231, 1
    %v234 = vsel %vm232, %v215, %v150
    %v235 = vsel %vm233, %v216, %v152
    %v236 = vsel %vm232, %v217, %v154
    %v237 = vsel %vm233, %v218, %v156
    %v238 = vsel %vm232, %v219, %v160
    %v239 = vsel %vm233, %v220, %v162
    %v240 = vsel %vm232, %v221, %v164
    %v241 = vsel %vm233, %v222, %v166
    %s242 = scalar_lea.vmem %s6, 1
    %v243 = vld [vmem:[%s242] ss:$8 sm:$0x3]
    %vm244 = vcmp.gt.f32.partialorder %v243, 0.5
    %253 = vrot.lane.b32.xlu0 %v234, 126
    %v254 = vpop.permute.xlu0 %253
    %255 = vrot.lane.b32.xlu0 %v235, 126
    %v256 = vpop.permute.xlu0 %255
    %257 = vrot.lane.b32.xlu0 %v236, 126
    %v258 = vpop.permute.xlu0 %257
    %259 = vrot.lane.b32.xlu0 %v237, 126
    %v260 = vpop.permute.xlu0 %259
    %261 = vrot.lane.b32.xlu0 %v238, 126
    %v262 = vpop.permute.xlu0 %261
    %263 = vrot.lane.b32.xlu0 %v239, 126
    %v264 = vpop.permute.xlu0 %263
    %265 = vrot.lane.b32.xlu0 %v240, 126
    %v266 = vpop.permute.xlu0 %265
    %267 = vrot.lane.b32.xlu0 %v241, 126
    %v268 = vpop.permute.xlu0 %267
    %vm269 = vcmask 1031168
    %v270 = vsel %vm269, %v254, %v256
    %v271 = vsel %vm269, %v258, %v260
    %v272 = vsel %vm269, %v262, %v264
    %v273 = vsel %vm269, %v266, %v268
    %v286 = vsel %vm269, %v256, %v254
    %v287 = vsel %vm269, %v260, %v258
    %v288 = vsel %vm269, %v264, %v262
    %v289 = vsel %vm269, %v268, %v266
    %v290 = vmax.f32 %v234, %v270
    %v291 = vmax.f32 %v235, %v286
    %v292 = vmax.f32 %v236, %v271
    %v293 = vmax.f32 %v237, %v287
    %v294 = vmax.f32 %v238, %v272
    %v295 = vmax.f32 %v239, %v288
    %v296 = vmax.f32 %v240, %v273
    %v297 = vmax.f32 %v241, %v289
    %v298 = vsel %vm244, 1, 0
    %v299 = vlaneseq
    %v300 = vshrl.u32 %v299, 7
    %v301 = vsub.s32 0, %v300
    %v302 = vrot.slane %v298, %v301
    %v303 = vlaneseq
    %v304 = vshrl.u32 %v303, 7
    %v305 = vsub.s32 1, %v304
    %v306 = vrot.slane %v298, %v305
    %vm307 = vcmp.eq.s32.totalorder %v302, 1
    %vm308 = vcmp.eq.s32.totalorder %v306, 1
    %v309 = vsel %vm307, %v290, %v234
    %v310 = vsel %vm308, %v291, %v235
    %v311 = vsel %vm307, %v292, %v236
    %v312 = vsel %vm308, %v293, %v237
    %v313 = vsel %vm307, %v294, %v238
    %v314 = vsel %vm308, %v295, %v239
    %v315 = vsel %vm307, %v296, %v240
    %v316 = vsel %vm308, %v297, %v241
    %s317 = scalar_lea.vmem %s6, 2
    %v318 = vld [vmem:[%s317] ss:$8 sm:$0x3]
    %vm319 = vcmp.gt.f32.partialorder %v318, 0.5
    %328 = vrot.lane.b32.xlu0 %v309, 124
    %v329 = vpop.permute.xlu0 %328
    %330 = vrot.lane.b32.xlu0 %v310, 124
    %v331 = vpop.permute.xlu0 %330
    %332 = vrot.lane.b32.xlu0 %v311, 124
    %v333 = vpop.permute.xlu0 %332
    %334 = vrot.lane.b32.xlu0 %v312, 124
    %v335 = vpop.permute.xlu0 %334
    %336 = vrot.lane.b32.xlu0 %v313, 124
    %v337 = vpop.permute.xlu0 %336
    %338 = vrot.lane.b32.xlu0 %v314, 124
    %v339 = vpop.permute.xlu0 %338
    %340 = vrot.lane.b32.xlu0 %v315, 124
    %v341 = vpop.permute.xlu0 %340
    %342 = vrot.lane.b32.xlu0 %v316, 124
    %v343 = vpop.permute.xlu0 %342
    %vm344 = vcmask 1014784
    %v345 = vsel %vm344, %v329, %v331
    %v346 = vsel %vm344, %v333, %v335
    %v347 = vsel %vm344, %v337, %v339
    %v348 = vsel %vm344, %v341, %v343
    %v361 = vsel %vm344, %v331, %v329
    %v362 = vsel %vm344, %v335, %v333
    %v363 = vsel %vm344, %v339, %v337
    %v364 = vsel %vm344, %v343, %v341
    %v365 = vmax.f32 %v309, %v345
    %v366 = vmax.f32 %v310, %v361
    %v367 = vmax.f32 %v311, %v346
    %v368 = vmax.f32 %v312, %v362
    %v369 = vmax.f32 %v313, %v347
    %v370 = vmax.f32 %v314, %v363
    %v371 = vmax.f32 %v315, %v348
    %v372 = vmax.f32 %v316, %v364
    %v373 = vsel %vm319, 1, 0
    %v374 = vlaneseq
    %v375 = vshrl.u32 %v374, 7
    %v376 = vsub.s32 0, %v375
    %v377 = vrot.slane %v373, %v376
    %v378 = vlaneseq
    %v379 = vshrl.u32 %v378, 7
    %v380 = vsub.s32 1, %v379
    %v381 = vrot.slane %v373, %v380
    %vm382 = vcmp.eq.s32.totalorder %v377, 1
    %vm383 = vcmp.eq.s32.totalorder %v381, 1
    %v384 = vsel %vm382, %v365, %v309
    %v385 = vsel %vm383, %v366, %v310
    %v386 = vsel %vm382, %v367, %v311
    %v387 = vsel %vm383, %v368, %v312
    %v388 = vsel %vm382, %v369, %v313
    %v389 = vsel %vm383, %v370, %v314
    %v390 = vsel %vm382, %v371, %v315
    %v391 = vsel %vm383, %v372, %v316
    %s392 = scalar_lea.vmem %s6, 3
    %v393 = vld [vmem:[%s392] ss:$8 sm:$0x3]
    %vm394 = vcmp.gt.f32.partialorder %v393, 0.5
    %399 = vrot.lane.b32.xlu0 %v385, 1
    %v400 = vpop.permute.xlu0 %399
    %401 = vrot.lane.b32.xlu0 %v387, 1
    %v402 = vpop.permute.xlu0 %401
    %403 = vrot.lane.b32.xlu0 %v389, 1
    %v404 = vpop.permute.xlu0 %403
    %405 = vrot.lane.b32.xlu0 %v391, 1
    %v406 = vpop.permute.xlu0 %405
    %415 = vrot.lane.b32.xlu0 %v384, 1
    %v416 = vpop.permute.xlu0 %415
    %417 = vrot.lane.b32.xlu0 %v386, 1
    %v418 = vpop.permute.xlu0 %417
    %419 = vrot.lane.b32.xlu0 %v388, 1
    %v420 = vpop.permute.xlu0 %419
    %421 = vrot.lane.b32.xlu0 %v390, 1
    %v422 = vpop.permute.xlu0 %421
    %vm423 = vcmask 7168
    %v424 = vsel %vm423, %v416, %v400
    %v425 = vsel %vm423, %v418, %v402
    %v426 = vsel %vm423, %v420, %v404
    %v427 = vsel %vm423, %v422, %v406
    %v436 = vsel %vm423, %v400, %v416
    %v437 = vsel %vm423, %v402, %v418
    %v438 = vsel %vm423, %v404, %v420
    %v439 = vsel %vm423, %v406, %v422
    %v440 = vmax.f32 %v384, %v436
    %v441 = vmax.f32 %v385, %v424
    %v442 = vmax.f32 %v386, %v437
    %v443 = vmax.f32 %v387, %v425
    %v444 = vmax.f32 %v388, %v438
    %v445 = vmax.f32 %v389, %v426
    %v446 = vmax.f32 %v390, %v439
    %v447 = vmax.f32 %v391, %v427
    %v448 = vsel %vm394, 1, 0
    %v449 = vlaneseq
    %v450 = vshrl.u32 %v449, 7
    %v451 = vsub.s32 0, %v450
    %v452 = vrot.slane %v448, %v451
    %v453 = vlaneseq
    %v454 = vshrl.u32 %v453, 7
    %v455 = vsub.s32 1, %v454
    %v456 = vrot.slane %v448, %v455
    %vm457 = vcmp.eq.s32.totalorder %v452, 1
    %vm458 = vcmp.eq.s32.totalorder %v456, 1
    %v459 = vsel %vm457, %v440, %v384
    %v460 = vsel %vm458, %v441, %v385
    %v461 = vsel %vm457, %v442, %v386
    %v462 = vsel %vm458, %v443, %v387
    %v463 = vsel %vm457, %v444, %v388
    %v464 = vsel %vm458, %v445, %v389
    %v465 = vsel %vm457, %v446, %v390
    %v466 = vsel %vm458, %v447, %v391
    %s467 = scalar_lea.vmem %s6, 4
    %v468 = vld [vmem:[%s467] ss:$8 sm:$0x3]
    %vm469 = vcmp.gt.f32.partialorder %v468, 0.5
    %474 = vrot.lane.b32.xlu0 %v460, 2
    %v475 = vpop.permute.xlu0 %474
    %476 = vrot.lane.b32.xlu0 %v462, 2
    %v477 = vpop.permute.xlu0 %476
    %478 = vrot.lane.b32.xlu0 %v464, 2
    %v479 = vpop.permute.xlu0 %478
    %480 = vrot.lane.b32.xlu0 %v466, 2
    %v481 = vpop.permute.xlu0 %480
    %490 = vrot.lane.b32.xlu0 %v459, 2
    %v491 = vpop.permute.xlu0 %490
    %492 = vrot.lane.b32.xlu0 %v461, 2
    %v493 = vpop.permute.xlu0 %492
    %494 = vrot.lane.b32.xlu0 %v463, 2
    %v495 = vpop.permute.xlu0 %494
    %496 = vrot.lane.b32.xlu0 %v465, 2
    %v497 = vpop.permute.xlu0 %496
    %vm498 = vcmask 15360
    %v499 = vsel %vm498, %v491, %v475
    %v500 = vsel %vm498, %v493, %v477
    %v501 = vsel %vm498, %v495, %v479
    %v502 = vsel %vm498, %v497, %v481
    %v511 = vsel %vm498, %v475, %v491
    %v512 = vsel %vm498, %v477, %v493
    %v513 = vsel %vm498, %v479, %v495
    %v514 = vsel %vm498, %v481, %v497
    %v515 = vmax.f32 %v459, %v511
    %v516 = vmax.f32 %v460, %v499
    %v517 = vmax.f32 %v461, %v512
    %v518 = vmax.f32 %v462, %v500
    %v519 = vmax.f32 %v463, %v513
    %v520 = vmax.f32 %v464, %v501
    %v521 = vmax.f32 %v465, %v514
    %v522 = vmax.f32 %v466, %v502
    %v523 = vsel %vm469, 1, 0
    %v524 = vlaneseq
    %v525 = vshrl.u32 %v524, 7
    %v526 = vsub.s32 0, %v525
    %v527 = vrot.slane %v523, %v526
    %v528 = vlaneseq
    %v529 = vshrl.u32 %v528, 7
    %v530 = vsub.s32 1, %v529
    %v531 = vrot.slane %v523, %v530
    %vm532 = vcmp.eq.s32.totalorder %v527, 1
    %vm533 = vcmp.eq.s32.totalorder %v531, 1
    %v534 = vsel %vm532, %v515, %v459
    %v535 = vsel %vm533, %v516, %v460
    %v536 = vsel %vm532, %v517, %v461
    %v537 = vsel %vm533, %v518, %v462
    %v538 = vsel %vm532, %v519, %v463
    %v539 = vsel %vm533, %v520, %v464
    %v540 = vsel %vm532, %v521, %v465
    %v541 = vsel %vm533, %v522, %v466
    %s542 = scalar_lea.vmem %s6, 5
    %v543 = vld [vmem:[%s542] ss:$8 sm:$0x3]
    %vm544 = vcmp.gt.f32.partialorder %v543, 0.5
    %549 = vrot.lane.b32.xlu0 %v535, 4
    %v550 = vpop.permute.xlu0 %549
    %551 = vrot.lane.b32.xlu0 %v537, 4
    %v552 = vpop.permute.xlu0 %551
    %553 = vrot.lane.b32.xlu0 %v539, 4
    %v554 = vpop.permute.xlu0 %553
    %555 = vrot.lane.b32.xlu0 %v541, 4
    %v556 = vpop.permute.xlu0 %555
    %565 = vrot.lane.b32.xlu0 %v534, 4
    %v566 = vpop.permute.xlu0 %565
    %567 = vrot.lane.b32.xlu0 %v536, 4
    %v568 = vpop.permute.xlu0 %567
    %569 = vrot.lane.b32.xlu0 %v538, 4
    %v570 = vpop.permute.xlu0 %569
    %571 = vrot.lane.b32.xlu0 %v540, 4
    %v572 = vpop.permute.xlu0 %571
    %vm573 = vcmask 31744
    %v574 = vsel %vm573, %v566, %v550
    %v575 = vsel %vm573, %v568, %v552
    %v576 = vsel %vm573, %v570, %v554
    %v577 = vsel %vm573, %v572, %v556
    %v586 = vsel %vm573, %v550, %v566
    %v587 = vsel %vm573, %v552, %v568
    %v588 = vsel %vm573, %v554, %v570
    %v589 = vsel %vm573, %v556, %v572
    %v590 = vmax.f32 %v534, %v586
    %v591 = vmax.f32 %v535, %v574
    %v592 = vmax.f32 %v536, %v587
    %v593 = vmax.f32 %v537, %v575
    %v594 = vmax.f32 %v538, %v588
    %v595 = vmax.f32 %v539, %v576
    %v596 = vmax.f32 %v540, %v589
    %v597 = vmax.f32 %v541, %v577
    %v598 = vsel %vm544, 1, 0
    %v599 = vlaneseq
    %v600 = vshrl.u32 %v599, 7
    %v601 = vsub.s32 0, %v600
    %v602 = vrot.slane %v598, %v601
    %v603 = vlaneseq
    %v604 = vshrl.u32 %v603, 7
    %v605 = vsub.s32 1, %v604
    %v606 = vrot.slane %v598, %v605
    %vm607 = vcmp.eq.s32.totalorder %v602, 1
    %vm608 = vcmp.eq.s32.totalorder %v606, 1
    %v609 = vsel %vm607, %v590, %v534
    %v610 = vsel %vm608, %v591, %v535
    %v611 = vsel %vm607, %v592, %v536
    %v612 = vsel %vm608, %v593, %v537
    %v613 = vsel %vm607, %v594, %v538
    %v614 = vsel %vm608, %v595, %v539
    %v615 = vsel %vm607, %v596, %v540
    %v616 = vsel %vm608, %v597, %v541
    %v617 = vsub.f32 %v150, %v609
    %v618 = vsub.f32 %v152, %v610
    %v619 = vsub.f32 %v154, %v611
    %v620 = vsub.f32 %v156, %v612
    %v621 = vsub.f32 %v160, %v613
    %v622 = vsub.f32 %v162, %v614
    %v623 = vsub.f32 %v164, %v615
    %v624 = vsub.f32 %v166, %v616
    %v625 = vmul.f32 %v617, 1.442695
    %v626 = vpow.pop %v625
    %v627 = vmul.f32 %v618, 1.442695
    %v628 = vpow.pop %v627
    %v629 = vmul.f32 %v619, 1.442695
    %v630 = vpow.pop %v629
    %v631 = vmul.f32 %v620, 1.442695
    %v632 = vpow.pop %v631
    %v633 = vmul.f32 %v621, 1.442695
    %v634 = vpow.pop %v633
    %v635 = vmul.f32 %v622, 1.442695
    %v636 = vpow.pop %v635
    %v637 = vmul.f32 %v623, 1.442695
    %v638 = vpow.pop %v637
    %v639 = vmul.f32 %v624, 1.442695
    %v640 = vpow.pop %v639
    %v641 = vld [vmem:[#allocation2] sm:$0xff]
    %v642 = vld [vmem:[#allocation2 + $0x8] sm:$0xff]
    %v643 = vld [vmem:[#allocation2 + $0x10] sm:$0xff]
    %v644 = vld [vmem:[#allocation2 + $0x18] sm:$0xff]
    %v645 = vld [vmem:[#allocation2 + $0x20] sm:$0xff]
    %v646 = vld [vmem:[#allocation2 + $0x28] sm:$0xff]
    %v647 = vld [vmem:[#allocation2 + $0x30] sm:$0xff]
    %v648 = vld [vmem:[#allocation2 + $0x38] sm:$0xff]
    %v649 = vld [vmem:[#allocation2 + $0x40] sm:$0xff]
    %v650 = vld [vmem:[#allocation2 + $0x48] sm:$0xff]
    %v651 = vld [vmem:[#allocation2 + $0x50] sm:$0xff]
    %v652 = vld [vmem:[#allocation2 + $0x58] sm:$0xff]
    %v653 = vld [vmem:[#allocation2 + $0x60] sm:$0xff]
    %v654 = vld [vmem:[#allocation2 + $0x68] sm:$0xff]
    %v655 = vld [vmem:[#allocation2 + $0x70] sm:$0xff]
    %v656 = vld [vmem:[#allocation2 + $0x78] sm:$0xff]
    %v657 = vld [vmem:[#allocation2 + $0x80] sm:$0xff]
    %v658 = vld [vmem:[#allocation2 + $0x88] sm:$0xff]
    %v659 = vld [vmem:[#allocation2 + $0x90] sm:$0xff]
    %v660 = vld [vmem:[#allocation2 + $0x98] sm:$0xff]
    %v661 = vld [vmem:[#allocation2 + $0xa0] sm:$0xff]
    %v662 = vld [vmem:[#allocation2 + $0xa8] sm:$0xff]
    %v663 = vld [vmem:[#allocation2 + $0xb0] sm:$0xff]
    %v664 = vld [vmem:[#allocation2 + $0xb8] sm:$0xff]
    %v665 = vld [vmem:[#allocation2 + $0xc0] sm:$0xff]
    %v666 = vld [vmem:[#allocation2 + $0xc8] sm:$0xff]
    %v667 = vld [vmem:[#allocation2 + $0xd0] sm:$0xff]
    %v668 = vld [vmem:[#allocation2 + $0xd8] sm:$0xff]
    %v669 = vld [vmem:[#allocation2 + $0xe0] sm:$0xff]
    %v670 = vld [vmem:[#allocation2 + $0xe8] sm:$0xff]
    %v671 = vld [vmem:[#allocation2 + $0xf0] sm:$0xff]
    %v672 = vld [vmem:[#allocation2 + $0xf8] sm:$0xff]
    %v673 = vld [vmem:[#allocation2 + $0x100] sm:$0xff]
    %v674 = vld [vmem:[#allocation2 + $0x108] sm:$0xff]
    %v675 = vld [vmem:[#allocation2 + $0x110] sm:$0xff]
    %v676 = vld [vmem:[#allocation2 + $0x118] sm:$0xff]
    %v677 = vld [vmem:[#allocation2 + $0x120] sm:$0xff]
    %v678 = vld [vmem:[#allocation2 + $0x128] sm:$0xff]
    %v679 = vld [vmem:[#allocation2 + $0x130] sm:$0xff]
    %v680 = vld [vmem:[#allocation2 + $0x138] sm:$0xff]
    %v681 = vld [vmem:[#allocation2 + $0x140] sm:$0xff]
    %v682 = vld [vmem:[#allocation2 + $0x148] sm:$0xff]
    %v683 = vld [vmem:[#allocation2 + $0x150] sm:$0xff]
    %v684 = vld [vmem:[#allocation2 + $0x158] sm:$0xff]
    %v685 = vld [vmem:[#allocation2 + $0x160] sm:$0xff]
    %v686 = vld [vmem:[#allocation2 + $0x168] sm:$0xff]
    %v687 = vld [vmem:[#allocation2 + $0x170] sm:$0xff]
    %v688 = vld [vmem:[#allocation2 + $0x178] sm:$0xff]
    %v689 = vld [vmem:[#allocation2 + $0x180] sm:$0xff]
    %v690 = vld [vmem:[#allocation2 + $0x188] sm:$0xff]
    %v691 = vld [vmem:[#allocation2 + $0x190] sm:$0xff]
    %v692 = vld [vmem:[#allocation2 + $0x198] sm:$0xff]
    %v693 = vld [vmem:[#allocation2 + $0x1a0] sm:$0xff]
    %v694 = vld [vmem:[#allocation2 + $0x1a8] sm:$0xff]
    %v695 = vld [vmem:[#allocation2 + $0x1b0] sm:$0xff]
    %v696 = vld [vmem:[#allocation2 + $0x1b8] sm:$0xff]
    %v697 = vld [vmem:[#allocation2 + $0x1c0] sm:$0xff]
    %v698 = vld [vmem:[#allocation2 + $0x1c8] sm:$0xff]
    %v699 = vld [vmem:[#allocation2 + $0x1d0] sm:$0xff]
    %v700 = vld [vmem:[#allocation2 + $0x1d8] sm:$0xff]
    %v701 = vld [vmem:[#allocation2 + $0x1e0] sm:$0xff]
    %v702 = vld [vmem:[#allocation2 + $0x1e8] sm:$0xff]
    %v703 = vld [vmem:[#allocation2 + $0x1f0] sm:$0xff]
    %v704 = vld [vmem:[#allocation2 + $0x1f8] sm:$0xff]
    %705 = vmatprep.subr.mxu0 %v672
    %706 = vmatpush1.msra.mxu0 %v671
    %707 = vmatprep.subr.mxu0 %v670
    %708 = vmatpush1.msra.mxu0 %v669
    %709 = vmatprep.subr.mxu0 %v668
    %710 = vmatpush1.msra.mxu0 %v667
    %711 = vmatprep.subr.mxu0 %v666
    %712 = vmatpush1.msra.mxu0 %v665
    %713 = vmatprep.subr.mxu0 %v664
    %714 = vmatpush1.msra.mxu0 %v663
    %715 = vmatprep.subr.mxu0 %v662
    %716 = vmatpush1.msra.mxu0 %v661
    %717 = vmatprep.subr.mxu0 %v660
    %718 = vmatpush1.msra.mxu0 %v659
    %719 = vmatprep.subr.mxu0 %v658
    %720 = vmatpush1.msra.mxu0 %v657
    %721 = vmatprep.subr.mxu0 %v656
    %722 = vmatpush1.msra.mxu0 %v655
    %723 = vmatprep.subr.mxu0 %v654
    %724 = vmatpush1.msra.mxu0 %v653
    %725 = vmatprep.subr.mxu0 %v652
    %726 = vmatpush1.msra.mxu0 %v651
    %727 = vmatprep.subr.mxu0 %v650
    %728 = vmatpush1.msra.mxu0 %v649
    %729 = vmatprep.subr.mxu0 %v648
    %730 = vmatpush1.msra.mxu0 %v647
    %731 = vmatprep.subr.mxu0 %v646
    %732 = vmatpush1.msra.mxu0 %v645
    %733 = vmatprep.subr.mxu0 %v644
    %734 = vmatpush1.msra.mxu0 %v643
    %735 = vmatprep.subr.mxu0 %v642
    %736 = vmatpush1.msra.mxu0 %v641
    %737 = vmatprep.subr.mxu0 %v704
    %738 = vmatpush2.msra.mxu0 %v703
    %739 = vmatprep.subr.mxu0 %v702
    %740 = vmatpush2.msra.mxu0 %v701
    %741 = vmatprep.subr.mxu0 %v700
    %742 = vmatpush2.msra.mxu0 %v699
    %743 = vmatprep.subr.mxu0 %v698
    %744 = vmatpush2.msra.mxu0 %v697
    %745 = vmatprep.subr.mxu0 %v696
    %746 = vmatpush2.msra.mxu0 %v695
    %747 = vmatprep.subr.mxu0 %v694
    %748 = vmatpush2.msra.mxu0 %v693
    %749 = vmatprep.subr.mxu0 %v692
    %750 = vmatpush2.msra.mxu0 %v691
    %751 = vmatprep.subr.mxu0 %v690
    %752 = vmatpush2.msra.mxu0 %v689
    %753 = vmatprep.subr.mxu0 %v688
    %754 = vmatpush2.msra.mxu0 %v687
    %755 = vmatprep.subr.mxu0 %v686
    %756 = vmatpush2.msra.mxu0 %v685
    %757 = vmatprep.subr.mxu0 %v684
    %758 = vmatpush2.msra.mxu0 %v683
    %759 = vmatprep.subr.mxu0 %v682
    %760 = vmatpush2.msra.mxu0 %v681
    %761 = vmatprep.subr.mxu0 %v680
    %762 = vmatpush2.msra.mxu0 %v679
    %763 = vmatprep.subr.mxu0 %v678
    %764 = vmatpush2.msra.mxu0 %v677
    %765 = vmatprep.subr.mxu0 %v676
    %766 = vmatpush2.msra.mxu0 %v675
    %767 = vmatprep.subr.mxu0 %v674
    %768 = vmatpush2.msra.mxu0 %v673
    %769 = vmatprep.mubr.f32.mxu0 %v628
    %770 = vmatmul.mubr.f32.gmra.mxu0 %v626
    %v771 = vpop.f32.mrf.mxu0
    %v772 = vadd.f32 0.0, %v771
    %v773 = vpop.f32.mrf.mxu0
    %v774 = vadd.f32 0.0, %v773
    %775 = vmatprep.mubr.f32.mxu0 %v632
    %776 = vmatmul.mubr.f32.gmra.mxu0 %v630
    %v777 = vpop.f32.mrf.mxu0
    %v778 = vadd.f32 0.0, %v777
    %v779 = vpop.f32.mrf.mxu0
    %v780 = vadd.f32 0.0, %v779
    %781 = vmatprep.mubr.f32.mxu0 %v636
    %782 = vmatmul.mubr.f32.gmra.mxu0 %v634
    %v783 = vpop.f32.mrf.mxu0
    %v784 = vadd.f32 0.0, %v783
    %v785 = vpop.f32.mrf.mxu0
    %v786 = vadd.f32 0.0, %v785
    %787 = vmatprep.mubr.f32.mxu0 %v640
    %788 = vmatmul.mubr.f32.gmra.mxu0 %v638
    %v789 = vpop.f32.mrf.mxu0
    %v790 = vadd.f32 0.0, %v789
    %v791 = vpop.f32.mrf.mxu0
    %v792 = vadd.f32 0.0, %v791
    %793 = vdwg.mxu0
    %v794 = vrcp.pop %v772
    %v795 = vmul.f32 %v626, %v794
    %v796 = vrcp.pop %v774
    %v797 = vmul.f32 %v628, %v796
    %v798 = vrcp.pop %v778
    %v799 = vmul.f32 %v630, %v798
    %v800 = vrcp.pop %v780
    %v801 = vmul.f32 %v632, %v800
    %v802 = vrcp.pop %v784
    %v803 = vmul.f32 %v634, %v802
    %v804 = vrcp.pop %v786
    %v805 = vmul.f32 %v636, %v804
    %v806 = vrcp.pop %v790
    %v807 = vmul.f32 %v638, %v806
    %v808 = vrcp.pop %v792
    %v809 = vmul.f32 %v640, %v808
    %v810 = vld [vmem:[%s4] sm:$0x3]
    %v811 = vld [vmem:[%s5] sm:$0x3]
    %v813 = vlaneseq
    %v814 = vshrl.u32 %v813, 7
    %v815 = vsub.s32 0, %v814
    %v816 = vrot.slane %v811, %v815
    %v817 = vlaneseq
    %v818 = vshrl.u32 %v817, 7
    %v819 = vsub.s32 1, %v818
    %v820 = vrot.slane %v811, %v819
    %v823 = vmul.f32 %v816, %v795
    %v824 = vmul.f32 %v820, %v797
    %v825 = vmul.f32 %v816, %v799
    %v826 = vmul.f32 %v820, %v801
    %v827 = vmul.f32 %v816, %v803
    %v828 = vmul.f32 %v820, %v805
    %v829 = vmul.f32 %v816, %v807
    %v830 = vmul.f32 %v820, %v809
    %v832 = vlaneseq
    %v833 = vshrl.u32 %v832, 7
    %v834 = vsub.s32 0, %v833
    %v835 = vrot.slane %v810, %v834
    %v836 = vlaneseq
    %v837 = vshrl.u32 %v836, 7
    %v838 = vsub.s32 1, %v837
    %v839 = vrot.slane %v810, %v838
    %v842 = vadd.f32 %v835, %v823
    %v843 = vadd.f32 %v839, %v824
    %v844 = vadd.f32 %v835, %v825
    %v845 = vadd.f32 %v839, %v826
    %v846 = vadd.f32 %v835, %v827
    %v847 = vadd.f32 %v839, %v828
    %v848 = vadd.f32 %v835, %v829
    %v849 = vadd.f32 %v839, %v830
    %v850 = vlog2.pop %v842
    %v851 = vmul.f32 %v850, 0.6931472
    %v852 = vlog2.pop %v843
    %v853 = vmul.f32 %v852, 0.6931472
    %v854 = vlog2.pop %v844
    %v855 = vmul.f32 %v854, 0.6931472
    %v856 = vlog2.pop %v845
    %v857 = vmul.f32 %v856, 0.6931472
    %v858 = vlog2.pop %v846
    %v859 = vmul.f32 %v858, 0.6931472
    %v860 = vlog2.pop %v847
    %v861 = vmul.f32 %v860, 0.6931472
    %v862 = vlog2.pop %v848
    %v863 = vmul.f32 %v862, 0.6931472
    %v864 = vlog2.pop %v849
    %v865 = vmul.f32 %v864, 0.6931472
    %vm866 = vcmask 523264
    %867 = vst.msk [vmem:[#allocation5] sm:$0xff] %vm866, %v851
    %868 = vst.msk [vmem:[#allocation5 + $0x8] sm:$0xff] %vm866, %v855
    %869 = vst.msk [vmem:[#allocation5 + $0x10] sm:$0xff] %vm866, %v859
    %870 = vst.msk [vmem:[#allocation5 + $0x18] sm:$0xff] %vm866, %v863
    %879 = vrot.lane.b32.xlu0 %v851, 64
    %v880 = vpop.permute.xlu0 %879
    %881 = vrot.lane.b32.xlu0 %v853, 64
    %v882 = vpop.permute.xlu0 %881
    %883 = vrot.lane.b32.xlu0 %v855, 64
    %v884 = vpop.permute.xlu0 %883
    %885 = vrot.lane.b32.xlu0 %v857, 64
    %v886 = vpop.permute.xlu0 %885
    %887 = vrot.lane.b32.xlu0 %v859, 64
    %v888 = vpop.permute.xlu0 %887
    %889 = vrot.lane.b32.xlu0 %v861, 64
    %v890 = vpop.permute.xlu0 %889
    %891 = vrot.lane.b32.xlu0 %v863, 64
    %v892 = vpop.permute.xlu0 %891
    %893 = vrot.lane.b32.xlu0 %v865, 64
    %v894 = vpop.permute.xlu0 %893
    %v895 = vsel %vm866, %v880, %v882
    %v896 = vsel %vm866, %v884, %v886
    %v897 = vsel %vm866, %v888, %v890
    %v898 = vsel %vm866, %v892, %v894
    %907 = vst [vmem:[#allocation6] sm:$0xff] %v895
    %908 = vst.msk [vmem:[#allocation6 + $0x8] sm:$0xff] %vm866, %v882
    %909 = vst [vmem:[#allocation6 + $0x10] sm:$0xff] %v896
    %910 = vst.msk [vmem:[#allocation6 + $0x18] sm:$0xff] %vm866, %v886
    %911 = vst [vmem:[#allocation6 + $0x20] sm:$0xff] %v897
    %912 = vst.msk [vmem:[#allocation6 + $0x28] sm:$0xff] %vm866, %v890
    %913 = vst [vmem:[#allocation6 + $0x30] sm:$0xff] %v898
    %914 = vst.msk [vmem:[#allocation6 + $0x38] sm:$0xff] %vm866, %v894
    %v915 = vld [vmem:[%s1] sm:$0xff]
    %v916 = vld [vmem:[%s1 + $0x8] sm:$0xff]
    %v917 = vld [vmem:[%s1 + $0x10] sm:$0xff]
    %v918 = vld [vmem:[%s1 + $0x18] sm:$0xff]
    %v919 = vld [vmem:[%s8] sm:$0xff]
    %v920 = vld [vmem:[%s8 + $0x8] sm:$0xff]
    %v921 = vld [vmem:[%s8 + $0x10] sm:$0xff]
    %v922 = vld [vmem:[%s8 + $0x18] sm:$0xff]
    %v923 = vld [vmem:[%s8 + $0x20] sm:$0xff]
    %v924 = vld [vmem:[%s8 + $0x28] sm:$0xff]
    %vm925 = vcmask 195584
    %v927 = vsel %vm925, %v915, 0
    %v930 = vsel %vm925, %v916, 0
    %v933 = vsel %vm925, %v917, 0
    %v936 = vsel %vm925, %v918, 0
    %938 = vmatprep.subr.mxu0 0.0
    %939 = vmatpush1.msra.mxu0 0.0
    %940 = vmatprep.subr.mxu0 0.0
    %941 = vmatpush1.msra.mxu0 0.0
    %942 = vmatprep.subr.mxu0 0.0
    %943 = vmatpush1.msra.mxu0 0.0
    %944 = vmatprep.subr.mxu0 0.0
    %945 = vmatpush1.msra.mxu0 0.0
    %946 = vmatprep.subr.mxu0 0.0
    %947 = vmatpush1.msra.mxu0 0.0
    %948 = vmatprep.subr.mxu0 0.0
    %949 = vmatpush1.msra.mxu0 0.0
    %950 = vmatprep.subr.mxu0 0.0
    %951 = vmatpush1.msra.mxu0 0.0
    %952 = vmatprep.subr.mxu0 0.0
    %953 = vmatpush1.msra.mxu0 0.0
    %954 = vmatprep.subr.mxu0 0.0
    %955 = vmatpush1.msra.mxu0 0.0
    %956 = vmatprep.subr.mxu0 0.0
    %957 = vmatpush1.msra.mxu0 0.0
    %958 = vmatprep.subr.mxu0 0.0
    %959 = vmatpush1.msra.mxu0 0.0
    %960 = vmatprep.subr.mxu0 0.0
    %961 = vmatpush1.msra.mxu0 0.0
    %962 = vmatprep.subr.mxu0 0.0
    %963 = vmatpush1.msra.mxu0 0.0
    %964 = vmatprep.subr.mxu0 %v924
    %965 = vmatpush1.msra.mxu0 %v923
    %966 = vmatprep.subr.mxu0 %v922
    %967 = vmatpush1.msra.mxu0 %v921
    %968 = vmatprep.subr.mxu0 %v920
    %969 = vmatpush1.msra.mxu0 %v919
    %970 = vmatprep.subr.mxu0 0.0
    %971 = vmatpush2.msra.mxu0 0.0
    %972 = vmatprep.subr.mxu0 0.0
    %973 = vmatpush2.msra.mxu0 0.0
    %974 = vmatprep.subr.mxu0 0.0
    %975 = vmatpush2.msra.mxu0 0.0
    %976 = vmatprep.subr.mxu0 0.0
    %977 = vmatpush2.msra.mxu0 0.0
    %978 = vmatprep.subr.mxu0 0.0
    %979 = vmatpush2.msra.mxu0 0.0
    %980 = vmatprep.subr.mxu0 0.0
    %981 = vmatpush2.msra.mxu0 0.0
    %982 = vmatprep.subr.mxu0 0.0
    %983 = vmatpush2.msra.mxu0 0.0
    %984 = vmatprep.subr.mxu0 0.0
    %985 = vmatpush2.msra.mxu0 0.0
    %986 = vmatprep.subr.mxu0 0.0
    %987 = vmatpush2.msra.mxu0 0.0
    %988 = vmatprep.subr.mxu0 0.0
    %989 = vmatpush2.msra.mxu0 0.0
    %990 = vmatprep.subr.mxu0 0.0
    %991 = vmatpush2.msra.mxu0 0.0
    %992 = vmatprep.subr.mxu0 0.0
    %993 = vmatpush2.msra.mxu0 0.0
    %994 = vmatprep.subr.mxu0 0.0
    %995 = vmatpush2.msra.mxu0 0.0
    %996 = vmatprep.subr.mxu0 0.0
    %997 = vmatpush2.msra.mxu0 0.0
    %998 = vmatprep.subr.mxu0 0.0
    %999 = vmatpush2.msra.mxu0 0.0
    %1000 = vmatprep.subr.mxu0 0.0
    %1001 = vmatpush2.msra.mxu0 0.0
    %1002 = vmatprep.mubr.f32.mxu0 0.0
    %1003 = vmatmul.mubr.f32.gmra.mxu0 %v927
    %v1004 = vpop.f32.mrf.mxu0
    %v1005 = vadd.f32 0.0, %v1004
    %v1006 = vpop.f32.mrf.mxu0
    %v1007 = vadd.f32 0.0, %v1006
    %1008 = vmatprep.mubr.f32.mxu0 0.0
    %1009 = vmatmul.mubr.f32.gmra.mxu0 %v930
    %v1010 = vpop.f32.mrf.mxu0
    %v1011 = vadd.f32 0.0, %v1010
    %v1012 = vpop.f32.mrf.mxu0
    %v1013 = vadd.f32 0.0, %v1012
    %1014 = vmatprep.mubr.f32.mxu0 0.0
    %1015 = vmatmul.mubr.f32.gmra.mxu0 %v933
    %v1016 = vpop.f32.mrf.mxu0
    %v1017 = vadd.f32 0.0, %v1016
    %v1018 = vpop.f32.mrf.mxu0
    %v1019 = vadd.f32 0.0, %v1018
    %1020 = vmatprep.mubr.f32.mxu0 0.0
    %1021 = vmatmul.mubr.f32.gmra.mxu0 %v936
    %v1022 = vpop.f32.mrf.mxu0
    %v1023 = vadd.f32 0.0, %v1022
    %v1024 = vpop.f32.mrf.mxu0
    %v1025 = vadd.f32 0.0, %v1024
    %1026 = vdwg.mxu0
    %1035 = vrot.lane.b32.xlu0 %v1005, 64
    %v1036 = vpop.permute.xlu0 %1035
    %1037 = vrot.lane.b32.xlu0 %v1007, 64
    %v1038 = vpop.permute.xlu0 %1037
    %1039 = vrot.lane.b32.xlu0 %v1011, 64
    %v1040 = vpop.permute.xlu0 %1039
    %1041 = vrot.lane.b32.xlu0 %v1013, 64
    %v1042 = vpop.permute.xlu0 %1041
    %1043 = vrot.lane.b32.xlu0 %v1017, 64
    %v1044 = vpop.permute.xlu0 %1043
    %1045 = vrot.lane.b32.xlu0 %v1019, 64
    %v1046 = vpop.permute.xlu0 %1045
    %1047 = vrot.lane.b32.xlu0 %v1023, 64
    %v1048 = vpop.permute.xlu0 %1047
    %1049 = vrot.lane.b32.xlu0 %v1025, 64
    %v1050 = vpop.permute.xlu0 %1049
    %v1051 = vsel %vm866, %v1036, %v1038
    %v1052 = vsel %vm866, %v1040, %v1042
    %v1053 = vsel %vm866, %v1044, %v1046
    %v1054 = vsel %vm866, %v1048, %v1050
    %v1063 = vmul.f32 %v842, %v1036
    %v1064 = vmul.f32 %v843, %v1051
    %v1065 = vmul.f32 %v844, %v1040
    %v1066 = vmul.f32 %v845, %v1052
    %v1067 = vmul.f32 %v846, %v1044
    %v1068 = vmul.f32 %v847, %v1053
    %v1069 = vmul.f32 %v848, %v1048
    %v1070 = vmul.f32 %v849, %v1054
    %v1071 = vld [vmem:[%s9] sm:$0xff]
    %v1072 = vld [vmem:[%s9 + $0x8] sm:$0xff]
    %v1073 = vld [vmem:[%s9 + $0x10] sm:$0xff]
    %v1074 = vld [vmem:[%s9 + $0x18] sm:$0xff]
    %v1075 = vld [vmem:[%s9 + $0x20] sm:$0xff]
    %v1076 = vld [vmem:[%s9 + $0x28] sm:$0xff]
    %v1077 = vld [vmem:[%s9 + $0x30] sm:$0xff]
    %v1078 = vld [vmem:[%s9 + $0x38] sm:$0xff]
    %v1079 = vld [vmem:[%s9 + $0x40] sm:$0xff]
    %v1080 = vld [vmem:[%s9 + $0x48] sm:$0xff]
    %v1081 = vld [vmem:[%s9 + $0x50] sm:$0xff]
    %v1082 = vld [vmem:[%s9 + $0x58] sm:$0xff]
    %v1083 = vld [vmem:[%s9 + $0x60] sm:$0xff]
    %v1084 = vld [vmem:[%s9 + $0x68] sm:$0xff]
    %v1085 = vld [vmem:[%s9 + $0x70] sm:$0xff]
    %v1086 = vld [vmem:[%s9 + $0x78] sm:$0xff]
    %v1087 = vld [vmem:[%s9 + $0x80] sm:$0xff]
    %v1088 = vld [vmem:[%s9 + $0x88] sm:$0xff]
    %v1089 = vld [vmem:[%s9 + $0x90] sm:$0xff]
    %v1090 = vld [vmem:[%s9 + $0x98] sm:$0xff]
    %v1091 = vld [vmem:[%s9 + $0xa0] sm:$0xff]
    %v1092 = vld [vmem:[%s9 + $0xa8] sm:$0xff]
    %v1093 = vld [vmem:[%s9 + $0xb0] sm:$0xff]
    %v1094 = vld [vmem:[%s9 + $0xb8] sm:$0xff]
    %1103 = vrot.lane.b32.xlu0 %v1063, 64
    %v1104 = vpop.permute.xlu0 %1103
    %1105 = vrot.lane.b32.xlu0 %v1064, 64
    %v1106 = vpop.permute.xlu0 %1105
    %1107 = vrot.lane.b32.xlu0 %v1065, 64
    %v1108 = vpop.permute.xlu0 %1107
    %1109 = vrot.lane.b32.xlu0 %v1066, 64
    %v1110 = vpop.permute.xlu0 %1109
    %1111 = vrot.lane.b32.xlu0 %v1067, 64
    %v1112 = vpop.permute.xlu0 %1111
    %1113 = vrot.lane.b32.xlu0 %v1068, 64
    %v1114 = vpop.permute.xlu0 %1113
    %1115 = vrot.lane.b32.xlu0 %v1069, 64
    %v1116 = vpop.permute.xlu0 %1115
    %1117 = vrot.lane.b32.xlu0 %v1070, 64
    %v1118 = vpop.permute.xlu0 %1117
    %v1119 = vsel %vm866, %v1104, %v1106
    %v1120 = vsel %vm866, %v1108, %v1110
    %v1121 = vsel %vm866, %v1112, %v1114
    %v1122 = vsel %vm866, %v1116, %v1118
    %v1127 = vsel %vm866, %v1106, 0
    %v1129 = vsel %vm866, %v1110, 0
    %v1131 = vsel %vm866, %v1114, 0
    %v1133 = vsel %vm866, %v1118, 0
    %1135 = vmatprep.subr.mxu0 0.0
    %1136 = vmatpush1.msra.mxu0 %v1086
    %1137 = vmatprep.subr.mxu0 0.0
    %1138 = vmatpush1.msra.mxu0 %v1085
    %1139 = vmatprep.subr.mxu0 0.0
    %1140 = vmatpush1.msra.mxu0 %v1084
    %1141 = vmatprep.subr.mxu0 0.0
    %1142 = vmatpush1.msra.mxu0 %v1083
    %1143 = vmatprep.subr.mxu0 0.0
    %1144 = vmatpush1.msra.mxu0 %v1082
    %1145 = vmatprep.subr.mxu0 0.0
    %1146 = vmatpush1.msra.mxu0 %v1081
    %1147 = vmatprep.subr.mxu0 0.0
    %1148 = vmatpush1.msra.mxu0 %v1080
    %1149 = vmatprep.subr.mxu0 0.0
    %1150 = vmatpush1.msra.mxu0 %v1079
    %1151 = vmatprep.subr.mxu0 0.0
    %1152 = vmatpush1.msra.mxu0 %v1078
    %1153 = vmatprep.subr.mxu0 0.0
    %1154 = vmatpush1.msra.mxu0 %v1077
    %1155 = vmatprep.subr.mxu0 0.0
    %1156 = vmatpush1.msra.mxu0 %v1076
    %1157 = vmatprep.subr.mxu0 0.0
    %1158 = vmatpush1.msra.mxu0 %v1075
    %1159 = vmatprep.subr.mxu0 0.0
    %1160 = vmatpush1.msra.mxu0 %v1074
    %1161 = vmatprep.subr.mxu0 0.0
    %1162 = vmatpush1.msra.mxu0 %v1073
    %1163 = vmatprep.subr.mxu0 0.0
    %1164 = vmatpush1.msra.mxu0 %v1072
    %1165 = vmatprep.subr.mxu0 0.0
    %1166 = vmatpush1.msra.mxu0 %v1071
    %1167 = vmatprep.subr.mxu0 0.0
    %1168 = vmatpush2.msra.mxu0 0.0
    %1169 = vmatprep.subr.mxu0 0.0
    %1170 = vmatpush2.msra.mxu0 0.0
    %1171 = vmatprep.subr.mxu0 0.0
    %1172 = vmatpush2.msra.mxu0 0.0
    %1173 = vmatprep.subr.mxu0 0.0
    %1174 = vmatpush2.msra.mxu0 0.0
    %1175 = vmatprep.subr.mxu0 0.0
    %1176 = vmatpush2.msra.mxu0 0.0
    %1177 = vmatprep.subr.mxu0 0.0
    %1178 = vmatpush2.msra.mxu0 0.0
    %1179 = vmatprep.subr.mxu0 0.0
    %1180 = vmatpush2.msra.mxu0 0.0
    %1181 = vmatprep.subr.mxu0 0.0
    %1182 = vmatpush2.msra.mxu0 0.0
    %1183 = vmatprep.subr.mxu0 0.0
    %1184 = vmatpush2.msra.mxu0 %v1094
    %1185 = vmatprep.subr.mxu0 0.0
    %1186 = vmatpush2.msra.mxu0 %v1093
    %1187 = vmatprep.subr.mxu0 0.0
    %1188 = vmatpush2.msra.mxu0 %v1092
    %1189 = vmatprep.subr.mxu0 0.0
    %1190 = vmatpush2.msra.mxu0 %v1091
    %1191 = vmatprep.subr.mxu0 0.0
    %1192 = vmatpush2.msra.mxu0 %v1090
    %1193 = vmatprep.subr.mxu0 0.0
    %1194 = vmatpush2.msra.mxu0 %v1089
    %1195 = vmatprep.subr.mxu0 0.0
    %1196 = vmatpush2.msra.mxu0 %v1088
    %1197 = vmatprep.subr.mxu0 0.0
    %1198 = vmatpush2.msra.mxu0 %v1087
    %1199 = vmatprep.mubr.f32.mxu0 %v1127
    %1200 = vmatmul.mubr.f32.gmra.mxu0 %v1119
    %v1201 = vpop.f32.mrf.mxu0
    %v1202 = vadd.f32 0.0, %v1201
    %v1203 = vpop.f32.mrf.mxu0
    %1204 = vmatprep.mubr.f32.mxu0 %v1129
    %1205 = vmatmul.mubr.f32.gmra.mxu0 %v1120
    %v1206 = vpop.f32.mrf.mxu0
    %v1207 = vadd.f32 0.0, %v1206
    %v1208 = vpop.f32.mrf.mxu0
    %1209 = vmatprep.mubr.f32.mxu0 %v1131
    %1210 = vmatmul.mubr.f32.gmra.mxu0 %v1121
    %v1211 = vpop.f32.mrf.mxu0
    %v1212 = vadd.f32 0.0, %v1211
    %v1213 = vpop.f32.mrf.mxu0
    %1214 = vmatprep.mubr.f32.mxu0 %v1133
    %1215 = vmatmul.mubr.f32.gmra.mxu0 %v1122
    %v1216 = vpop.f32.mrf.mxu0
    %v1217 = vadd.f32 0.0, %v1216
    %v1218 = vpop.f32.mrf.mxu0
    %1219 = vdwg.mxu0
    %v1220 = vlog2.pop %v1202
    %v1221 = vmul.f32 %v1220, 0.6931472
    %v1222 = vlog2.pop %v1207
    %v1223 = vmul.f32 %v1222, 0.6931472
    %v1224 = vlog2.pop %v1212
    %v1225 = vmul.f32 %v1224, 0.6931472
    %v1226 = vlog2.pop %v1217
    %v1227 = vmul.f32 %v1226, 0.6931472
    %v1228 = vld [vmem:[%s10] sm:$0xff]
    %v1229 = vld [vmem:[%s10 + $0x8] sm:$0xff]
    %v1230 = vld [vmem:[%s10 + $0x10] sm:$0xff]
    %v1232 = vsel %vm925, %v1221, 0
    %v1235 = vsel %vm925, %v1223, 0
    %v1238 = vsel %vm925, %v1225, 0
    %v1241 = vsel %vm925, %v1227, 0
    %1243 = vmatprep.subr.mxu0 0.0
    %1244 = vmatpush1.msra.mxu0 0.0
    %1245 = vmatprep.subr.mxu0 0.0
    %1246 = vmatpush1.msra.mxu0 0.0
    %1247 = vmatprep.subr.mxu0 0.0
    %1248 = vmatpush1.msra.mxu0 0.0
    %1249 = vmatprep.subr.mxu0 0.0
    %1250 = vmatpush1.msra.mxu0 0.0
    %1251 = vmatprep.subr.mxu0 0.0
    %1252 = vmatpush1.msra.mxu0 0.0
    %1253 = vmatprep.subr.mxu0 0.0
    %1254 = vmatpush1.msra.mxu0 0.0
    %1255 = vmatprep.subr.mxu0 0.0
    %1256 = vmatpush1.msra.mxu0 0.0
    %1257 = vmatprep.subr.mxu0 0.0
    %1258 = vmatpush1.msra.mxu0 0.0
    %1259 = vmatprep.subr.mxu0 0.0
    %1260 = vmatpush1.msra.mxu0 0.0
    %1261 = vmatprep.subr.mxu0 0.0
    %1262 = vmatpush1.msra.mxu0 0.0
    %1263 = vmatprep.subr.mxu0 0.0
    %1264 = vmatpush1.msra.mxu0 0.0
    %1265 = vmatprep.subr.mxu0 0.0
    %1266 = vmatpush1.msra.mxu0 0.0
    %1267 = vmatprep.subr.mxu0 0.0
    %1268 = vmatpush1.msra.mxu0 0.0
    %1269 = vmatprep.subr.mxu0 0.0
    %1270 = vmatpush1.msra.mxu0 %v1230
    %1271 = vmatprep.subr.mxu0 0.0
    %1272 = vmatpush1.msra.mxu0 %v1229
    %1273 = vmatprep.subr.mxu0 0.0
    %1274 = vmatpush1.msra.mxu0 %v1228
    %1275 = vmatprep.subr.mxu0 0.0
    %1276 = vmatpush2.msra.mxu0 0.0
    %1277 = vmatprep.subr.mxu0 0.0
    %1278 = vmatpush2.msra.mxu0 0.0
    %1279 = vmatprep.subr.mxu0 0.0
    %1280 = vmatpush2.msra.mxu0 0.0
    %1281 = vmatprep.subr.mxu0 0.0
    %1282 = vmatpush2.msra.mxu0 0.0
    %1283 = vmatprep.subr.mxu0 0.0
    %1284 = vmatpush2.msra.mxu0 0.0
    %1285 = vmatprep.subr.mxu0 0.0
    %1286 = vmatpush2.msra.mxu0 0.0
    %1287 = vmatprep.subr.mxu0 0.0
    %1288 = vmatpush2.msra.mxu0 0.0
    %1289 = vmatprep.subr.mxu0 0.0
    %1290 = vmatpush2.msra.mxu0 0.0
    %1291 = vmatprep.subr.mxu0 0.0
    %1292 = vmatpush2.msra.mxu0 0.0
    %1293 = vmatprep.subr.mxu0 0.0
    %1294 = vmatpush2.msra.mxu0 0.0
    %1295 = vmatprep.subr.mxu0 0.0
    %1296 = vmatpush2.msra.mxu0 0.0
    %1297 = vmatprep.subr.mxu0 0.0
    %1298 = vmatpush2.msra.mxu0 0.0
    %1299 = vmatprep.subr.mxu0 0.0
    %1300 = vmatpush2.msra.mxu0 0.0
    %1301 = vmatprep.subr.mxu0 0.0
    %1302 = vmatpush2.msra.mxu0 0.0
    %1303 = vmatprep.subr.mxu0 0.0
    %1304 = vmatpush2.msra.mxu0 0.0
    %1305 = vmatprep.subr.mxu0 0.0
    %1306 = vmatpush2.msra.mxu0 0.0
    %1307 = vmatprep.mubr.f32.mxu0 0.0
    %1308 = vmatmul.mubr.f32.gmra.mxu0 %v1232
    %v1309 = vpop.f32.mrf.mxu0
    %v1310 = vadd.f32 0.0, %v1309
    %v1311 = vpop.f32.mrf.mxu0
    %1312 = vmatprep.mubr.f32.mxu0 0.0
    %1313 = vmatmul.mubr.f32.gmra.mxu0 %v1235
    %v1314 = vpop.f32.mrf.mxu0
    %v1315 = vadd.f32 0.0, %v1314
    %v1316 = vpop.f32.mrf.mxu0
    %1317 = vmatprep.mubr.f32.mxu0 0.0
    %1318 = vmatmul.mubr.f32.gmra.mxu0 %v1238
    %v1319 = vpop.f32.mrf.mxu0
    %v1320 = vadd.f32 0.0, %v1319
    %v1321 = vpop.f32.mrf.mxu0
    %1322 = vmatprep.mubr.f32.mxu0 0.0
    %1323 = vmatmul.mubr.f32.gmra.mxu0 %v1241
    %v1324 = vpop.f32.mrf.mxu0
    %v1325 = vadd.f32 0.0, %v1324
    %v1326 = vpop.f32.mrf.mxu0
    %1327 = vdwg.mxu0
    %vm1328 = vcmask 64512
    %1329 = vst.msk [vmem:[%s13] sm:$0xff] %vm1328, %v1310
    %1330 = vst.msk [vmem:[%s13 + $0x8] sm:$0xff] %vm1328, %v1315
    %1331 = vst.msk [vmem:[%s13 + $0x10] sm:$0xff] %vm1328, %v1320
    %1332 = vst.msk [vmem:[%s13 + $0x18] sm:$0xff] %vm1328, %v1325
    // Predicated region
    $region50: #{tpu_custom_call.1} parent=1 // pred_check
      _
    $region51: #{tpu_custom_call.1} parent=1 // pred_check_branch
      %1334 = sbr.rel (0) target = $region53
    $region52: #{tpu_custom_call.1} parent=1 // pred_region
      %s1336 = ssub.s32 512, 512
      %1337 = vsyncadd [#allocation4], %s1336
      %s1338 = sshll.u32 [#allocation5], 4
      %s1339 = int_to_ptr.vmem [resolvable:$true] %s1338
      %1344 = dma.vmem_to_hbm [thread:$0]  %s1339, 512, %s11, [#allocation4], 128, 128, 8
    $region53: #{tpu_custom_call.1} parent=1 // pred_fallthru
      _
    // Predicated region
    $region54: #{tpu_custom_call.1} parent=1 // pred_check
      _
    $region55: #{tpu_custom_call.1} parent=1 // pred_check_branch
      %1346 = sbr.rel (0) target = $region57
    $region56: #{tpu_custom_call.1} parent=1 // pred_region
      %s1348 = ssub.s32 1024, 1024
      %1349 = vsyncadd [#allocation7], %s1348
      %s1350 = sshll.u32 [#allocation6], 4
      %s1351 = int_to_ptr.vmem [resolvable:$true] %s1350
      %1356 = dma.vmem_to_hbm [thread:$0]  %s1351, 1024, %s12, [#allocation7], 256, 256, 16
    $region57: #{tpu_custom_call.1} parent=1 // pred_fallthru
      _
    // Predicated region
    $region58: #{tpu_custom_call.1} parent=1 // pred_check
      _
    $region59: #{tpu_custom_call.1} parent=1 // pred_check_branch
      %1358 = sbr.rel (0) target = $region61
    $region60: #{tpu_custom_call.1} parent=1 // pred_region
      _
    $region61: #{tpu_custom_call.1} parent=1 // pred_fallthru
      _
    // Predicated region
    $region62: #{tpu_custom_call.1} parent=1 // pred_check
      _
    $region63: #{tpu_custom_call.1} parent=1 // pred_check_branch
      %1360 = sbr.rel (0) target = $region65
    $region64: #{tpu_custom_call.1} parent=1 // pred_region
      %1361 = dma.done [#allocation4], 512
    $region65: #{tpu_custom_call.1} parent=1 // pred_fallthru
      _
    // Predicated region
    $region66: #{tpu_custom_call.1} parent=1 // pred_check
      _
    $region67: #{tpu_custom_call.1} parent=1 // pred_check_branch
      %1363 = sbr.rel (0) target = $region69
    $region68: #{tpu_custom_call.1} parent=1 // pred_region
      %1364 = dma.done [#allocation7], 1024
    $region69: #{tpu_custom_call.1} parent=1 // pred_fallthru
      _
    // Predicated region
    $region70: #{tpu_custom_call.1} parent=1 // pred_check
      _
    $region71: #{tpu_custom_call.1} parent=1 // pred_check_branch
      %1366 = sbr.rel (0) target = $region73
    $region72: #{tpu_custom_call.1} parent=1 // pred_region
      _
    $region73: #{tpu_custom_call.1} parent=1 // pred_fallthru
      _
    %1367 = vsyncpa [#allocation3], 1
    %1368 = vsyncpa [#allocation4], 1
    %1369 = vsyncpa [#allocation7], 1

</llo_original>
